<compile_context>
chip_gen: v5e
topology: v5e:2x2
jax: 0.10.0
libtpu: 0.0.40
codegen_flags: <defaults>
</compile_context>

<pallas_src>
import math

import numpy as np

import jax
import jax.numpy as jnp
from jax.experimental import pallas as pl
from jax.experimental.pallas import tpu as pltpu

CHAR_EMBEDDING_DIM = 6
CHAR_HIDDEN_DIM = 3
WORD_EMBEDDING_DIM = 5
WORD_HIDDEN_DIM = 6


def _gate_perm(H):
    # PyTorch packs LSTM gates as (i, f, g, o); repack to (i, f, o, g) so the
    # kernel applies one sigmoid over the first 3H lanes and one tanh on the rest.
    return np.concatenate([np.arange(0, H), np.arange(H, 2 * H),
                           np.arange(3 * H, 4 * H), np.arange(2 * H, 3 * H)])


# --------------------------------------------------------------------------
# Fused tagger kernel (char LSTMs -> word LSTM -> linear + log_softmax).
# --------------------------------------------------------------------------
def _make_tagger_kernel(Lmax, T, NW, Hc, Hw, C, all_active):
    """Kernel closed over all static dims so both recurrences fully unroll."""
    # Static row offsets into the coalesced operand buffer (see wrapper).
    r_cwhh = 0                       # (Hc,  4Hc)  char W_hh^T   (gates i|f|o|g)
    r_wihc = Hc                      # (Hc,  4Hw)  word W_ih^T, char-final columns
    r_wwhh = 2 * Hc                  # (Hw,  4Hw)  word W_hh^T
    r_tagw = 2 * Hc + Hw             # (Hw,  C)    hidden2tag W^T
    r_tagb = 2 * Hc + 2 * Hw         # (1,   C)    hidden2tag bias
    r_wxp = r_tagb + 1               # (T,   4Hw)  word-LSTM input projections
    r_mask = r_wxp + T               # (NW,  Lmax) per-word char valid mask (f32)

    def lstm_cell(gates, c, H):
        # gate order (i | f | o | g): ONE sigmoid slab + ONE tanh on the EUP.
        act = jax.nn.sigmoid(gates[:, 0:3 * H])
        g = jnp.tanh(gates[:, 3 * H:4 * H])
        i_g = act[:, 0:H]
        f_g = act[:, H:2 * H]
        o_g = act[:, 2 * H:3 * H]
        c_new = f_g * c + i_g * g
        h_new = o_g * jnp.tanh(c_new)
        return h_new, c_new

    def kernel(char_xp_ref, wbuf_ref, out_ref):
        # ---- loop-invariant operand slices, hoisted out of both recurrences --
        char_whh_rows = [wbuf_ref[r_cwhh + k:r_cwhh + k + 1, 0:4 * Hc]
                         for k in range(Hc)]                       # Hc x (1, 4Hc)
        word_whh_rows = [wbuf_ref[r_wwhh + k:r_wwhh + k + 1, 0:4 * Hw]
                         for k in range(Hw)]                       # Hw x (1, 4Hw)
        mask_cols = [None] * Lmax
        for t in range(Lmax):
            if not all_active[t]:                                  # only mixed steps
                mask_cols[t] = wbuf_ref[r_mask:r_mask + NW, t:t + 1] > 0.5

        # ---- stage 1: all per-word char LSTMs, batched over the words --------
        h = jnp.zeros((NW, Hc), jnp.float32)
        c = jnp.zeros((NW, Hc), jnp.float32)
        for t in range(Lmax):                    # static unroll (Lmax small)
            gates = char_xp_ref[t]               # x_t @ W_ih + b (precomputed)
            for k in range(Hc):                  # VPU MAC: h @ W_hh, no MXU trip
                gates = gates + h[:, k:k + 1] * char_whh_rows[k]
            h_new, c_new = lstm_cell(gates, c, Hc)
            if all_active[t]:                    # trace-time constant fold
                h, c = h_new, c_new
            else:                                # hold h/c past each word's end
                h = jnp.where(mask_cols[t], h_new, h)
                c = jnp.where(mask_cols[t], c_new, c)
        char_finals = h                          # (NW, Hc) == per-word h_{len-1}

        # ---- stage 2: word LSTM (input projection hoisted off the chain) -----
        wih_ch = wbuf_ref[r_wihc:r_wihc + Hc, 0:4 * Hw]            # (Hc, 4Hw)
        word_xp = wbuf_ref[r_wxp:r_wxp + T, 0:4 * Hw]              # (T, 4Hw)
        word_proj = word_xp + jnp.dot(char_finals, wih_ch,
                                      preferred_element_type=jnp.float32)
        hw = jnp.zeros((1, Hw), jnp.float32)
        cw = jnp.zeros((1, Hw), jnp.float32)
        h_rows = []
        for t in range(T):                       # static unroll (T small)
            gates = word_proj[t:t + 1, :]
            for k in range(Hw):                  # VPU MAC on the serial path
                gates = gates + hw[:, k:k + 1] * word_whh_rows[k]
            hw, cw = lstm_cell(gates, cw, Hw)
            h_rows.append(hw)                    # stays in vregs (no scratch)
        lstm_out = jnp.concatenate(h_rows, axis=0)                 # (T, Hw)

        # ---- stage 3: hidden2tag + log_softmax epilogue, one output store -----
        tag_w = wbuf_ref[r_tagw:r_tagw + Hw, 0:C]
        tag_b = wbuf_ref[r_tagb:r_tagb + 1, 0:C]
        logits = jnp.dot(lstm_out, tag_w,
                         preferred_element_type=jnp.float32) + tag_b
        mx = jnp.max(logits, axis=-1, keepdims=True)
        s = logits - mx
        lse = jnp.log(jnp.sum(jnp.exp(s), axis=-1, keepdims=True))
        out_ref[...] = s - lse

    return kernel


# --------------------------------------------------------------------------
# One-time parameter packing (hoisted out of the jitted forward).
# --------------------------------------------------------------------------
def prepare_params(params):
    Hc, Hw, De = CHAR_HIDDEN_DIM, WORD_HIDDEN_DIM, WORD_EMBEDDING_DIM
    C = int(params["tag_w"].shape[0])
    pc, pw = _gate_perm(Hc), _gate_perm(Hw)

    char_wih_t = params["char_w_ih"][pc].T.astype(jnp.float32)                  # (6, 4Hc)
    char_whh_t = params["char_w_hh"][pc].T.astype(jnp.float32)                  # (Hc, 4Hc)
    char_b = (params["char_b_ih"] + params["char_b_hh"])[pc].astype(jnp.float32)

    w_ih = params["word_w_ih"][pw].astype(jnp.float32)                          # (4Hw, De+Hc)
    word_wih_word_t = w_ih[:, :De].T                                            # (De, 4Hw)
    wih_ch_t = w_ih[:, De:].T                                                   # (Hc, 4Hw)
    word_whh_t = params["word_w_hh"][pw].T.astype(jnp.float32)                  # (Hw, 4Hw)
    word_b = (params["word_b_ih"] + params["word_b_hh"])[pw].astype(jnp.float32)

    tag_w_t = params["tag_w"].T.astype(jnp.float32)                             # (Hw, C)
    tag_b = params["tag_b"].reshape(1, C).astype(jnp.float32)                   # (1, C)

    W = 4 * Hw

    def _padw(x):
        return jnp.pad(x, ((0, 0), (0, W - x.shape[1])))

    # Static part of the coalesced operand buffer (rows in the kernel's layout).
    static_buf = jnp.concatenate(
        [_padw(char_whh_t), _padw(wih_ch_t), _padw(word_whh_t),
         _padw(tag_w_t), _padw(tag_b)], axis=0)                                 # (2Hc+2Hw+1, 4Hw)

    return {
        "char_emb": params["char_emb"].astype(jnp.float32),
        "char_wih_t": char_wih_t,
        "char_b": char_b,
        "word_emb": params["word_emb"].astype(jnp.float32),
        "word_wih_word_t": word_wih_word_t,
        "word_b": word_b,
        "static_buf": static_buf,
    }


# --------------------------------------------------------------------------
# Forward wrapper: embedding gathers + input projections + ONE pallas_call.
# --------------------------------------------------------------------------
def lstm_tagger_forward(prep, word_ids, char_ids_list, *, tagset_size):
    T = int(word_ids.shape[0])
    NW = len(char_ids_list)
    assert NW == T
    Hc, Hw = CHAR_HIDDEN_DIM, WORD_HIDDEN_DIM
    C = tagset_size

    lens = [int(cid.shape[0]) for cid in char_ids_list]
    Lmax = max(lens)
    all_active = tuple(all(l > t for l in lens) for t in range(Lmax))
    # Per-word char-validity mask, stored transposed (NW, Lmax) so the kernel
    # reads a (NW, 1) column per timestep with a static lane slice.
    mask_T = (np.arange(Lmax)[None, :] < np.asarray(lens)[:, None]).astype(np.float32)

    # ---- plain-JAX glue: embedding gathers + hoisted input projections ------
    # TODO(synk): the embedding gathers could move in-kernel via scalar prefetch;
    # kept as XLA glue here since the tables are tiny and gathers are one op each.
    char_ids_padded = jnp.stack(
        [jnp.pad(cid, (0, Lmax - int(cid.shape[0]))) for cid in char_ids_list])  # (NW, Lmax)
    char_embeds = prep["char_emb"][char_ids_padded]                               # (NW, Lmax, 6)
    char_xp = (jnp.einsum("nld,dg->lng", char_embeds, prep["char_wih_t"])
               + prep["char_b"][None, None, :])                                   # (Lmax, NW, 4Hc)
    word_embeds = prep["word_emb"][word_ids]                                      # (T, De)
    word_xp = word_embeds @ prep["word_wih_word_t"] + prep["word_b"][None, :]     # (T, 4Hw)

    # ---- coalesce every small operand into ONE buffer (2 input DMAs total) ---
    W = max(4 * Hw, Lmax)

    def _padw(x):
        return jnp.pad(x, ((0, 0), (0, W - x.shape[1])))

    static_buf = prep["static_buf"]
    if static_buf.shape[1] < W:
        static_buf = _padw(static_buf)
    wbuf = jnp.concatenate(
        [static_buf, _padw(word_xp), _padw(jnp.asarray(mask_T))], axis=0)         # (R, W)
    R = int(wbuf.shape[0])

    kernel = _make_tagger_kernel(Lmax, T, NW, Hc, Hw, C, all_active)

    return pl.pallas_call(
        kernel,
        grid=(1,),
        in_specs=[
            pl.BlockSpec((Lmax, NW, 4 * Hc), lambda i: (0, 0, 0)),
            pl.BlockSpec((R, W), lambda i: (0, 0)),
        ],
        out_specs=pl.BlockSpec((T, C), lambda i: (0, 0)),
        out_shape=jax.ShapeDtypeStruct((T, C), jnp.float32),
        compiler_params=pltpu.CompilerParams(dimension_semantics=("arbitrary",)),
    )(char_xp, wbuf)


# --------------------------------------------------------------------------
# Pure-JAX reference (mirrors the PyTorch module) for correctness checking.
# --------------------------------------------------------------------------
def _lstm_ref(x, w_ih, w_hh, b_ih, b_hh):
    H = w_hh.shape[1]

    def step(carry, x_t):
        h, c = carry
        gates = x_t @ w_ih.T + b_ih + h @ w_hh.T + b_hh
        i, f, g, o = jnp.split(gates, 4)
        i, f, o = jax.nn.sigmoid(i), jax.nn.sigmoid(f), jax.nn.sigmoid(o)
        g = jnp.tanh(g)
        c = f * c + i * g
        h = o * jnp.tanh(c)
        return (h, c), h

    _, hs = jax.lax.scan(step, (jnp.zeros((H,), jnp.float32),
                                jnp.zeros((H,), jnp.float32)), x.astype(jnp.float32))
    return hs


def lstm_tagger_reference(params, word_ids, char_ids_list):
    char_finals = []
    for cid in char_ids_list:
        ce = params["char_emb"][cid]
        hs = _lstm_ref(ce, params["char_w_ih"], params["char_w_hh"],
                       params["char_b_ih"], params["char_b_hh"])
        char_finals.append(hs[-1])
    char_finals = jnp.stack(char_finals)
    embeds = jnp.concatenate([params["word_emb"][word_ids], char_finals], axis=1)
    hs = _lstm_ref(embeds, params["word_w_ih"], params["word_w_hh"],
                   params["word_b_ih"], params["word_b_hh"])
    logits = hs @ params["tag_w"].T + params["tag_b"]
    return jax.nn.log_softmax(logits, axis=-1)


def init_params(key, vocab_size, char_size, tagset_size):
    ks = jax.random.split(key, 12)

    def u(k, shape, scale):
        return jax.random.uniform(k, shape, jnp.float32, -scale, scale)

    ch_s = 1.0 / math.sqrt(CHAR_HIDDEN_DIM)
    wh_s = 1.0 / math.sqrt(WORD_HIDDEN_DIM)
    return {
        "char_emb": jax.random.normal(ks[0], (char_size, CHAR_EMBEDDING_DIM), jnp.float32),
        "char_w_ih": u(ks[1], (4 * CHAR_HIDDEN_DIM, CHAR_EMBEDDING_DIM), ch_s),
        "char_w_hh": u(ks[2], (4 * CHAR_HIDDEN_DIM, CHAR_HIDDEN_DIM), ch_s),
        "char_b_ih": u(ks[3], (4 * CHAR_HIDDEN_DIM,), ch_s),
        "char_b_hh": u(ks[4], (4 * CHAR_HIDDEN_DIM,), ch_s),
        "word_emb": jax.random.normal(ks[5], (vocab_size, WORD_EMBEDDING_DIM), jnp.float32),
        "word_w_ih": u(ks[6], (4 * WORD_HIDDEN_DIM, WORD_EMBEDDING_DIM + CHAR_HIDDEN_DIM), wh_s),
        "word_w_hh": u(ks[7], (4 * WORD_HIDDEN_DIM, WORD_HIDDEN_DIM), wh_s),
        "word_b_ih": u(ks[8], (4 * WORD_HIDDEN_DIM,), wh_s),
        "word_b_hh": u(ks[9], (4 * WORD_HIDDEN_DIM,), wh_s),
        "tag_w": u(ks[10], (tagset_size, WORD_HIDDEN_DIM), wh_s),
        "tag_b": u(ks[11], (tagset_size,), wh_s),
    }


if __name__ == "__main__":
    training_data = [
        ("The dog ate the apple".lower().split(), ["DET", "NN", "V", "DET", "NN"]),
        ("Everybody read that book".split(), ["NN", "V", "DET", "NN"]),
    ]
    tag_to_ix = {"DET": 0, "NN": 1, "V": 2}

    word_to_ix, char_to_ix = {}, {}
    for sent, _ in training_data:
        for w in sent:
            if w not in word_to_ix:
                word_to_ix[w] = len(word_to_ix)
            for ch in w:
                if ch not in char_to_ix:
                    char_to_ix[ch] = len(char_to_ix)

    params = init_params(jax.random.PRNGKey(0),
                         len(word_to_ix), len(char_to_ix), len(tag_to_ix))
    prep = prepare_params(params)                       # one-time packing, outside jit

    sentence = training_data[0][0]                      # 5 words
    word_ids = jnp.array([word_to_ix[w] for w in sentence], dtype=jnp.int32)
    char_ids_list = [jnp.array([char_to_ix[ch] for ch in w], dtype=jnp.int32)
                     for w in sentence]

    fwd = jax.jit(lstm_tagger_forward, static_argnames=("tagset_size",))
    tag_scores = jax.block_until_ready(
        fwd(prep, word_ids, char_ids_list, tagset_size=len(tag_to_ix)))

    assert tag_scores.shape == (len(sentence), len(tag_to_ix))
    assert bool(jnp.all(jnp.isfinite(tag_scores)))
    # rows of log_softmax must exp-sum to 1
    assert bool(jnp.allclose(jnp.sum(jnp.exp(tag_scores), axis=-1), 1.0, atol=1e-5))
    # match the pure-JAX reference of the PyTorch module
    ref = lstm_tagger_reference(params, word_ids, char_ids_list)
    assert bool(jnp.allclose(tag_scores, ref, atol=2e-4, rtol=2e-4)), \
        float(jnp.max(jnp.abs(tag_scores - ref)))
    print("KERNEL_OK")
</pallas_src>

<mosaic_0001>
module attributes {stable_mosaic.version = 11 : i64} {
  func.func @kernel(%arg0: i32, %arg1: memref<5x5x12xf32, #tpu.memory_space<vmem>>, %arg2: memref<29x24xf32, #tpu.memory_space<vmem>>, %arg3: memref<5x3xf32, #tpu.memory_space<vmem>>) attributes {dimension_semantics = [#tpu.dimension_semantics<arbitrary>], iteration_bounds = array<i64: 1>, scalar_prefetch = 0 : i64, scratch_operands = 0 : i64, tpu.core_type = #tpu.core_type<tc>, window_params = [{pipeline_mode = #tpu.pipeline_mode<synchronous>, transform_indices = @transform_0, window_bounds = array<i64: 5, 5, 12>}, {pipeline_mode = #tpu.pipeline_mode<synchronous>, transform_indices = @transform_1, window_bounds = array<i64: 29, 24>}, {pipeline_mode = #tpu.pipeline_mode<synchronous>, transform_indices = @transform_2, window_bounds = array<i64: 5, 3>}]} {
    %c0 = arith.constant 0 : index
    %c0_0 = arith.constant 0 : index
    %0 = vector.load %arg2[%c0, %c0_0] : memref<29x24xf32, #tpu.memory_space<vmem>>, vector<1x12xf32>
    %c1 = arith.constant 1 : index
    %c0_1 = arith.constant 0 : index
    %1 = vector.load %arg2[%c1, %c0_1] : memref<29x24xf32, #tpu.memory_space<vmem>>, vector<1x12xf32>
    %c2 = arith.constant 2 : index
    %c0_2 = arith.constant 0 : index
    %2 = vector.load %arg2[%c2, %c0_2] : memref<29x24xf32, #tpu.memory_space<vmem>>, vector<1x12xf32>
    %c6 = arith.constant 6 : index
    %c0_3 = arith.constant 0 : index
    %3 = vector.load %arg2[%c6, %c0_3] : memref<29x24xf32, #tpu.memory_space<vmem>>, vector<1x24xf32>
    %c7 = arith.constant 7 : index
    %c0_4 = arith.constant 0 : index
    %4 = vector.load %arg2[%c7, %c0_4] : memref<29x24xf32, #tpu.memory_space<vmem>>, vector<1x24xf32>
    %c8 = arith.constant 8 : index
    %c0_5 = arith.constant 0 : index
    %5 = vector.load %arg2[%c8, %c0_5] : memref<29x24xf32, #tpu.memory_space<vmem>>, vector<1x24xf32>
    %c9 = arith.constant 9 : index
    %c0_6 = arith.constant 0 : index
    %6 = vector.load %arg2[%c9, %c0_6] : memref<29x24xf32, #tpu.memory_space<vmem>>, vector<1x24xf32>
    %c10 = arith.constant 10 : index
    %c0_7 = arith.constant 0 : index
    %7 = vector.load %arg2[%c10, %c0_7] : memref<29x24xf32, #tpu.memory_space<vmem>>, vector<1x24xf32>
    %c11 = arith.constant 11 : index
    %c0_8 = arith.constant 0 : index
    %8 = vector.load %arg2[%c11, %c0_8] : memref<29x24xf32, #tpu.memory_space<vmem>>, vector<1x24xf32>
    %c24 = arith.constant 24 : index
    %c3 = arith.constant 3 : index
    %9 = vector.load %arg2[%c24, %c3] : memref<29x24xf32, #tpu.memory_space<vmem>>, vector<5x1xf32>
    %cst = arith.constant 5.000000e-01 : f32
    %10 = vector.broadcast %cst : f32 to vector<5x1xf32>
    %11 = arith.cmpf ogt, %9, %10 : vector<5x1xf32>
    %c24_9 = arith.constant 24 : index
    %c4 = arith.constant 4 : index
    %12 = vector.load %arg2[%c24_9, %c4] : memref<29x24xf32, #tpu.memory_space<vmem>>, vector<5x1xf32>
    %cst_10 = arith.constant 5.000000e-01 : f32
    %13 = vector.broadcast %cst_10 : f32 to vector<5x1xf32>
    %14 = arith.cmpf ogt, %12, %13 : vector<5x1xf32>
    %cst_11 = arith.constant 0.000000e+00 : f32
    %15 = vector.broadcast %cst_11 : f32 to vector<5x3xf32>
    %cst_12 = arith.constant 0.000000e+00 : f32
    %16 = vector.broadcast %cst_12 : f32 to vector<5x3xf32>
    %c0_13 = arith.constant 0 : index
    %c0_14 = arith.constant 0 : index
    %c0_15 = arith.constant 0 : index
    %17 = vector.load %arg1[%c0_13, %c0_14, %c0_15] : memref<5x5x12xf32, #tpu.memory_space<vmem>>, vector<1x5x12xf32>
    %18 = vector.shape_cast %17 : vector<1x5x12xf32> to vector<5x12xf32>
    %19 = vector.extract_strided_slice %15 {offsets = [0, 0], sizes = [5, 1], strides = [1, 1]} : vector<5x3xf32> to vector<5x1xf32>
    %20 = vector.broadcast %19 : vector<5x1xf32> to vector<5x12xf32>
    %21 = vector.broadcast %0 : vector<1x12xf32> to vector<5x12xf32>
    %22 = arith.mulf %20, %21 : vector<5x12xf32>
    %23 = arith.addf %18, %22 : vector<5x12xf32>
    %24 = vector.extract_strided_slice %15 {offsets = [0, 1], sizes = [5, 1], strides = [1, 1]} : vector<5x3xf32> to vector<5x1xf32>
    %25 = vector.broadcast %24 : vector<5x1xf32> to vector<5x12xf32>
    %26 = vector.broadcast %1 : vector<1x12xf32> to vector<5x12xf32>
    %27 = arith.mulf %25, %26 : vector<5x12xf32>
    %28 = arith.addf %23, %27 : vector<5x12xf32>
    %29 = vector.extract_strided_slice %15 {offsets = [0, 2], sizes = [5, 1], strides = [1, 1]} : vector<5x3xf32> to vector<5x1xf32>
    %30 = vector.broadcast %29 : vector<5x1xf32> to vector<5x12xf32>
    %31 = vector.broadcast %2 : vector<1x12xf32> to vector<5x12xf32>
    %32 = arith.mulf %30, %31 : vector<5x12xf32>
    %33 = arith.addf %28, %32 : vector<5x12xf32>
    %34 = vector.extract_strided_slice %33 {offsets = [0, 0], sizes = [5, 9], strides = [1, 1]} : vector<5x12xf32> to vector<5x9xf32>
    %35 = arith.negf %34 : vector<5x9xf32>
    %36 = math.exp %35 : vector<5x9xf32>
    %cst_16 = arith.constant 1.000000e+00 : f32
    %37 = vector.broadcast %cst_16 : f32 to vector<5x9xf32>
    %38 = arith.addf %37, %36 : vector<5x9xf32>
    %39 = arith.divf %37, %38 : vector<5x9xf32>
    %40 = vector.extract_strided_slice %33 {offsets = [0, 9], sizes = [5, 3], strides = [1, 1]} : vector<5x12xf32> to vector<5x3xf32>
    %41 = math.tanh %40 : vector<5x3xf32>
    %42 = vector.extract_strided_slice %39 {offsets = [0, 0], sizes = [5, 3], strides = [1, 1]} : vector<5x9xf32> to vector<5x3xf32>
    %43 = vector.extract_strided_slice %39 {offsets = [0, 3], sizes = [5, 3], strides = [1, 1]} : vector<5x9xf32> to vector<5x3xf32>
    %44 = vector.extract_strided_slice %39 {offsets = [0, 6], sizes = [5, 3], strides = [1, 1]} : vector<5x9xf32> to vector<5x3xf32>
    %45 = arith.mulf %43, %16 : vector<5x3xf32>
    %46 = arith.mulf %42, %41 : vector<5x3xf32>
    %47 = arith.addf %45, %46 : vector<5x3xf32>
    %48 = math.tanh %47 : vector<5x3xf32>
    %49 = arith.mulf %44, %48 : vector<5x3xf32>
    %c1_17 = arith.constant 1 : index
    %c0_18 = arith.constant 0 : index
    %c0_19 = arith.constant 0 : index
    %50 = vector.load %arg1[%c1_17, %c0_18, %c0_19] : memref<5x5x12xf32, #tpu.memory_space<vmem>>, vector<1x5x12xf32>
    %51 = vector.shape_cast %50 : vector<1x5x12xf32> to vector<5x12xf32>
    %52 = vector.extract_strided_slice %49 {offsets = [0, 0], sizes = [5, 1], strides = [1, 1]} : vector<5x3xf32> to vector<5x1xf32>
    %53 = vector.broadcast %52 : vector<5x1xf32> to vector<5x12xf32>
    %54 = vector.broadcast %0 : vector<1x12xf32> to vector<5x12xf32>
    %55 = arith.mulf %53, %54 : vector<5x12xf32>
    %56 = arith.addf %51, %55 : vector<5x12xf32>
    %57 = vector.extract_strided_slice %49 {offsets = [0, 1], sizes = [5, 1], strides = [1, 1]} : vector<5x3xf32> to vector<5x1xf32>
    %58 = vector.broadcast %57 : vector<5x1xf32> to vector<5x12xf32>
    %59 = vector.broadcast %1 : vector<1x12xf32> to vector<5x12xf32>
    %60 = arith.mulf %58, %59 : vector<5x12xf32>
    %61 = arith.addf %56, %60 : vector<5x12xf32>
    %62 = vector.extract_strided_slice %49 {offsets = [0, 2], sizes = [5, 1], strides = [1, 1]} : vector<5x3xf32> to vector<5x1xf32>
    %63 = vector.broadcast %62 : vector<5x1xf32> to vector<5x12xf32>
    %64 = vector.broadcast %2 : vector<1x12xf32> to vector<5x12xf32>
    %65 = arith.mulf %63, %64 : vector<5x12xf32>
    %66 = arith.addf %61, %65 : vector<5x12xf32>
    %67 = vector.extract_strided_slice %66 {offsets = [0, 0], sizes = [5, 9], strides = [1, 1]} : vector<5x12xf32> to vector<5x9xf32>
    %68 = arith.negf %67 : vector<5x9xf32>
    %69 = math.exp %68 : vector<5x9xf32>
    %cst_20 = arith.constant 1.000000e+00 : f32
    %70 = vector.broadcast %cst_20 : f32 to vector<5x9xf32>
    %71 = arith.addf %70, %69 : vector<5x9xf32>
    %72 = arith.divf %70, %71 : vector<5x9xf32>
    %73 = vector.extract_strided_slice %66 {offsets = [0, 9], sizes = [5, 3], strides = [1, 1]} : vector<5x12xf32> to vector<5x3xf32>
    %74 = math.tanh %73 : vector<5x3xf32>
    %75 = vector.extract_strided_slice %72 {offsets = [0, 0], sizes = [5, 3], strides = [1, 1]} : vector<5x9xf32> to vector<5x3xf32>
    %76 = vector.extract_strided_slice %72 {offsets = [0, 3], sizes = [5, 3], strides = [1, 1]} : vector<5x9xf32> to vector<5x3xf32>
    %77 = vector.extract_strided_slice %72 {offsets = [0, 6], sizes = [5, 3], strides = [1, 1]} : vector<5x9xf32> to vector<5x3xf32>
    %78 = arith.mulf %76, %47 : vector<5x3xf32>
    %79 = arith.mulf %75, %74 : vector<5x3xf32>
    %80 = arith.addf %78, %79 : vector<5x3xf32>
    %81 = math.tanh %80 : vector<5x3xf32>
    %82 = arith.mulf %77, %81 : vector<5x3xf32>
    %c2_21 = arith.constant 2 : index
    %c0_22 = arith.constant 0 : index
    %c0_23 = arith.constant 0 : index
    %83 = vector.load %arg1[%c2_21, %c0_22, %c0_23] : memref<5x5x12xf32, #tpu.memory_space<vmem>>, vector<1x5x12xf32>
    %84 = vector.shape_cast %83 : vector<1x5x12xf32> to vector<5x12xf32>
    %85 = vector.extract_strided_slice %82 {offsets = [0, 0], sizes = [5, 1], strides = [1, 1]} : vector<5x3xf32> to vector<5x1xf32>
    %86 = vector.broadcast %85 : vector<5x1xf32> to vector<5x12xf32>
    %87 = vector.broadcast %0 : vector<1x12xf32> to vector<5x12xf32>
    %88 = arith.mulf %86, %87 : vector<5x12xf32>
    %89 = arith.addf %84, %88 : vector<5x12xf32>
    %90 = vector.extract_strided_slice %82 {offsets = [0, 1], sizes = [5, 1], strides = [1, 1]} : vector<5x3xf32> to vector<5x1xf32>
    %91 = vector.broadcast %90 : vector<5x1xf32> to vector<5x12xf32>
    %92 = vector.broadcast %1 : vector<1x12xf32> to vector<5x12xf32>
    %93 = arith.mulf %91, %92 : vector<5x12xf32>
    %94 = arith.addf %89, %93 : vector<5x12xf32>
    %95 = vector.extract_strided_slice %82 {offsets = [0, 2], sizes = [5, 1], strides = [1, 1]} : vector<5x3xf32> to vector<5x1xf32>
    %96 = vector.broadcast %95 : vector<5x1xf32> to vector<5x12xf32>
    %97 = vector.broadcast %2 : vector<1x12xf32> to vector<5x12xf32>
    %98 = arith.mulf %96, %97 : vector<5x12xf32>
    %99 = arith.addf %94, %98 : vector<5x12xf32>
    %100 = vector.extract_strided_slice %99 {offsets = [0, 0], sizes = [5, 9], strides = [1, 1]} : vector<5x12xf32> to vector<5x9xf32>
    %101 = arith.negf %100 : vector<5x9xf32>
    %102 = math.exp %101 : vector<5x9xf32>
    %cst_24 = arith.constant 1.000000e+00 : f32
    %103 = vector.broadcast %cst_24 : f32 to vector<5x9xf32>
    %104 = arith.addf %103, %102 : vector<5x9xf32>
    %105 = arith.divf %103, %104 : vector<5x9xf32>
    %106 = vector.extract_strided_slice %99 {offsets = [0, 9], sizes = [5, 3], strides = [1, 1]} : vector<5x12xf32> to vector<5x3xf32>
    %107 = math.tanh %106 : vector<5x3xf32>
    %108 = vector.extract_strided_slice %105 {offsets = [0, 0], sizes = [5, 3], strides = [1, 1]} : vector<5x9xf32> to vector<5x3xf32>
    %109 = vector.extract_strided_slice %105 {offsets = [0, 3], sizes = [5, 3], strides = [1, 1]} : vector<5x9xf32> to vector<5x3xf32>
    %110 = vector.extract_strided_slice %105 {offsets = [0, 6], sizes = [5, 3], strides = [1, 1]} : vector<5x9xf32> to vector<5x3xf32>
    %111 = arith.mulf %109, %80 : vector<5x3xf32>
    %112 = arith.mulf %108, %107 : vector<5x3xf32>
    %113 = arith.addf %111, %112 : vector<5x3xf32>
    %114 = math.tanh %113 : vector<5x3xf32>
    %115 = arith.mulf %110, %114 : vector<5x3xf32>
    %c3_25 = arith.constant 3 : index
    %c0_26 = arith.constant 0 : index
    %c0_27 = arith.constant 0 : index
    %116 = vector.load %arg1[%c3_25, %c0_26, %c0_27] : memref<5x5x12xf32, #tpu.memory_space<vmem>>, vector<1x5x12xf32>
    %117 = vector.shape_cast %116 : vector<1x5x12xf32> to vector<5x12xf32>
    %118 = vector.extract_strided_slice %115 {offsets = [0, 0], sizes = [5, 1], strides = [1, 1]} : vector<5x3xf32> to vector<5x1xf32>
    %119 = vector.broadcast %118 : vector<5x1xf32> to vector<5x12xf32>
    %120 = vector.broadcast %0 : vector<1x12xf32> to vector<5x12xf32>
    %121 = arith.mulf %119, %120 : vector<5x12xf32>
    %122 = arith.addf %117, %121 : vector<5x12xf32>
    %123 = vector.extract_strided_slice %115 {offsets = [0, 1], sizes = [5, 1], strides = [1, 1]} : vector<5x3xf32> to vector<5x1xf32>
    %124 = vector.broadcast %123 : vector<5x1xf32> to vector<5x12xf32>
    %125 = vector.broadcast %1 : vector<1x12xf32> to vector<5x12xf32>
    %126 = arith.mulf %124, %125 : vector<5x12xf32>
    %127 = arith.addf %122, %126 : vector<5x12xf32>
    %128 = vector.extract_strided_slice %115 {offsets = [0, 2], sizes = [5, 1], strides = [1, 1]} : vector<5x3xf32> to vector<5x1xf32>
    %129 = vector.broadcast %128 : vector<5x1xf32> to vector<5x12xf32>
    %130 = vector.broadcast %2 : vector<1x12xf32> to vector<5x12xf32>
    %131 = arith.mulf %129, %130 : vector<5x12xf32>
    %132 = arith.addf %127, %131 : vector<5x12xf32>
    %133 = vector.extract_strided_slice %132 {offsets = [0, 0], sizes = [5, 9], strides = [1, 1]} : vector<5x12xf32> to vector<5x9xf32>
    %134 = arith.negf %133 : vector<5x9xf32>
    %135 = math.exp %134 : vector<5x9xf32>
    %cst_28 = arith.constant 1.000000e+00 : f32
    %136 = vector.broadcast %cst_28 : f32 to vector<5x9xf32>
    %137 = arith.addf %136, %135 : vector<5x9xf32>
    %138 = arith.divf %136, %137 : vector<5x9xf32>
    %139 = vector.extract_strided_slice %132 {offsets = [0, 9], sizes = [5, 3], strides = [1, 1]} : vector<5x12xf32> to vector<5x3xf32>
    %140 = math.tanh %139 : vector<5x3xf32>
    %141 = vector.extract_strided_slice %138 {offsets = [0, 0], sizes = [5, 3], strides = [1, 1]} : vector<5x9xf32> to vector<5x3xf32>
    %142 = vector.extract_strided_slice %138 {offsets = [0, 3], sizes = [5, 3], strides = [1, 1]} : vector<5x9xf32> to vector<5x3xf32>
    %143 = vector.extract_strided_slice %138 {offsets = [0, 6], sizes = [5, 3], strides = [1, 1]} : vector<5x9xf32> to vector<5x3xf32>
    %144 = arith.mulf %142, %113 : vector<5x3xf32>
    %145 = arith.mulf %141, %140 : vector<5x3xf32>
    %146 = arith.addf %144, %145 : vector<5x3xf32>
    %147 = math.tanh %146 : vector<5x3xf32>
    %148 = arith.mulf %143, %147 : vector<5x3xf32>
    %149 = vector.shape_cast %11 : vector<5x1xi1> to vector<5x1xi1>
    %150 = vector.broadcast %149 : vector<5x1xi1> to vector<5x3xi1>
    %151 = arith.select %150, %148, %115 : vector<5x3xi1>, vector<5x3xf32>
    %152 = vector.shape_cast %11 : vector<5x1xi1> to vector<5x1xi1>
    %153 = vector.broadcast %152 : vector<5x1xi1> to vector<5x3xi1>
    %154 = arith.select %153, %146, %113 : vector<5x3xi1>, vector<5x3xf32>
    %c4_29 = arith.constant 4 : index
    %c0_30 = arith.constant 0 : index
    %c0_31 = arith.constant 0 : index
    %155 = vector.load %arg1[%c4_29, %c0_30, %c0_31] : memref<5x5x12xf32, #tpu.memory_space<vmem>>, vector<1x5x12xf32>
    %156 = vector.shape_cast %155 : vector<1x5x12xf32> to vector<5x12xf32>
    %157 = vector.extract_strided_slice %151 {offsets = [0, 0], sizes = [5, 1], strides = [1, 1]} : vector<5x3xf32> to vector<5x1xf32>
    %158 = vector.broadcast %157 : vector<5x1xf32> to vector<5x12xf32>
    %159 = vector.broadcast %0 : vector<1x12xf32> to vector<5x12xf32>
    %160 = arith.mulf %158, %159 : vector<5x12xf32>
    %161 = arith.addf %156, %160 : vector<5x12xf32>
    %162 = vector.extract_strided_slice %151 {offsets = [0, 1], sizes = [5, 1], strides = [1, 1]} : vector<5x3xf32> to vector<5x1xf32>
    %163 = vector.broadcast %162 : vector<5x1xf32> to vector<5x12xf32>
    %164 = vector.broadcast %1 : vector<1x12xf32> to vector<5x12xf32>
    %165 = arith.mulf %163, %164 : vector<5x12xf32>
    %166 = arith.addf %161, %165 : vector<5x12xf32>
    %167 = vector.extract_strided_slice %151 {offsets = [0, 2], sizes = [5, 1], strides = [1, 1]} : vector<5x3xf32> to vector<5x1xf32>
    %168 = vector.broadcast %167 : vector<5x1xf32> to vector<5x12xf32>
    %169 = vector.broadcast %2 : vector<1x12xf32> to vector<5x12xf32>
    %170 = arith.mulf %168, %169 : vector<5x12xf32>
    %171 = arith.addf %166, %170 : vector<5x12xf32>
    %172 = vector.extract_strided_slice %171 {offsets = [0, 0], sizes = [5, 9], strides = [1, 1]} : vector<5x12xf32> to vector<5x9xf32>
    %173 = arith.negf %172 : vector<5x9xf32>
    %174 = math.exp %173 : vector<5x9xf32>
    %cst_32 = arith.constant 1.000000e+00 : f32
    %175 = vector.broadcast %cst_32 : f32 to vector<5x9xf32>
    %176 = arith.addf %175, %174 : vector<5x9xf32>
    %177 = arith.divf %175, %176 : vector<5x9xf32>
    %178 = vector.extract_strided_slice %171 {offsets = [0, 9], sizes = [5, 3], strides = [1, 1]} : vector<5x12xf32> to vector<5x3xf32>
    %179 = math.tanh %178 : vector<5x3xf32>
    %180 = vector.extract_strided_slice %177 {offsets = [0, 0], sizes = [5, 3], strides = [1, 1]} : vector<5x9xf32> to vector<5x3xf32>
    %181 = vector.extract_strided_slice %177 {offsets = [0, 3], sizes = [5, 3], strides = [1, 1]} : vector<5x9xf32> to vector<5x3xf32>
    %182 = vector.extract_strided_slice %177 {offsets = [0, 6], sizes = [5, 3], strides = [1, 1]} : vector<5x9xf32> to vector<5x3xf32>
    %183 = arith.mulf %181, %154 : vector<5x3xf32>
    %184 = arith.mulf %180, %179 : vector<5x3xf32>
    %185 = arith.addf %183, %184 : vector<5x3xf32>
    %186 = math.tanh %185 : vector<5x3xf32>
    %187 = arith.mulf %182, %186 : vector<5x3xf32>
    %188 = vector.shape_cast %14 : vector<5x1xi1> to vector<5x1xi1>
    %189 = vector.broadcast %188 : vector<5x1xi1> to vector<5x3xi1>
    %190 = arith.select %189, %187, %151 : vector<5x3xi1>, vector<5x3xf32>
    %c3_33 = arith.constant 3 : index
    %c0_34 = arith.constant 0 : index
    %191 = vector.load %arg2[%c3_33, %c0_34] : memref<29x24xf32, #tpu.memory_space<vmem>>, vector<3x24xf32>
    %c19 = arith.constant 19 : index
    %c0_35 = arith.constant 0 : index
    %192 = vector.load %arg2[%c19, %c0_35] : memref<29x24xf32, #tpu.memory_space<vmem>>, vector<5x24xf32>
    %cst_36 = arith.constant dense<0.000000e+00> : vector<5x24xf32>
    %193 = tpu.matmul %190, %191, %cst_36 {dimension_numbers = #tpu.dot_dimension_numbers<[1], [0], [0], [1], [0, 0, 1, 1], [], []>} : vector<5x3xf32>, vector<3x24xf32>, vector<5x24xf32> -> vector<5x24xf32>
    %194 = arith.addf %192, %193 : vector<5x24xf32>
    %cst_37 = arith.constant 0.000000e+00 : f32
    %195 = vector.broadcast %cst_37 : f32 to vector<1x6xf32>
    %cst_38 = arith.constant 0.000000e+00 : f32
    %196 = vector.broadcast %cst_38 : f32 to vector<1x6xf32>
    %197 = vector.extract_strided_slice %194 {offsets = [0, 0], sizes = [1, 24], strides = [1, 1]} : vector<5x24xf32> to vector<1x24xf32>
    %198 = vector.extract_strided_slice %195 {offsets = [0, 0], sizes = [1, 1], strides = [1, 1]} : vector<1x6xf32> to vector<1x1xf32>
    %199 = vector.broadcast %198 : vector<1x1xf32> to vector<1x24xf32>
    %200 = arith.mulf %199, %3 : vector<1x24xf32>
    %201 = arith.addf %197, %200 : vector<1x24xf32>
    %202 = vector.extract_strided_slice %195 {offsets = [0, 1], sizes = [1, 1], strides = [1, 1]} : vector<1x6xf32> to vector<1x1xf32>
    %203 = vector.broadcast %202 : vector<1x1xf32> to vector<1x24xf32>
    %204 = arith.mulf %203, %4 : vector<1x24xf32>
    %205 = arith.addf %201, %204 : vector<1x24xf32>
    %206 = vector.extract_strided_slice %195 {offsets = [0, 2], sizes = [1, 1], strides = [1, 1]} : vector<1x6xf32> to vector<1x1xf32>
    %207 = vector.broadcast %206 : vector<1x1xf32> to vector<1x24xf32>
    %208 = arith.mulf %207, %5 : vector<1x24xf32>
    %209 = arith.addf %205, %208 : vector<1x24xf32>
    %210 = vector.extract_strided_slice %195 {offsets = [0, 3], sizes = [1, 1], strides = [1, 1]} : vector<1x6xf32> to vector<1x1xf32>
    %211 = vector.broadcast %210 : vector<1x1xf32> to vector<1x24xf32>
    %212 = arith.mulf %211, %6 : vector<1x24xf32>
    %213 = arith.addf %209, %212 : vector<1x24xf32>
    %214 = vector.extract_strided_slice %195 {offsets = [0, 4], sizes = [1, 1], strides = [1, 1]} : vector<1x6xf32> to vector<1x1xf32>
    %215 = vector.broadcast %214 : vector<1x1xf32> to vector<1x24xf32>
    %216 = arith.mulf %215, %7 : vector<1x24xf32>
    %217 = arith.addf %213, %216 : vector<1x24xf32>
    %218 = vector.extract_strided_slice %195 {offsets = [0, 5], sizes = [1, 1], strides = [1, 1]} : vector<1x6xf32> to vector<1x1xf32>
    %219 = vector.broadcast %218 : vector<1x1xf32> to vector<1x24xf32>
    %220 = arith.mulf %219, %8 : vector<1x24xf32>
    %221 = arith.addf %217, %220 : vector<1x24xf32>
    %222 = vector.extract_strided_slice %221 {offsets = [0, 0], sizes = [1, 18], strides = [1, 1]} : vector<1x24xf32> to vector<1x18xf32>
    %223 = arith.negf %222 : vector<1x18xf32>
    %224 = math.exp %223 : vector<1x18xf32>
    %cst_39 = arith.constant 1.000000e+00 : f32
    %225 = vector.broadcast %cst_39 : f32 to vector<1x18xf32>
    %226 = arith.addf %225, %224 : vector<1x18xf32>
    %227 = arith.divf %225, %226 : vector<1x18xf32>
    %228 = vector.extract_strided_slice %221 {offsets = [0, 18], sizes = [1, 6], strides = [1, 1]} : vector<1x24xf32> to vector<1x6xf32>
    %229 = math.tanh %228 : vector<1x6xf32>
    %230 = vector.extract_strided_slice %227 {offsets = [0, 0], sizes = [1, 6], strides = [1, 1]} : vector<1x18xf32> to vector<1x6xf32>
    %231 = vector.extract_strided_slice %227 {offsets = [0, 6], sizes = [1, 6], strides = [1, 1]} : vector<1x18xf32> to vector<1x6xf32>
    %232 = vector.extract_strided_slice %227 {offsets = [0, 12], sizes = [1, 6], strides = [1, 1]} : vector<1x18xf32> to vector<1x6xf32>
    %233 = arith.mulf %231, %196 : vector<1x6xf32>
    %234 = arith.mulf %230, %229 : vector<1x6xf32>
    %235 = arith.addf %233, %234 : vector<1x6xf32>
    %236 = math.tanh %235 : vector<1x6xf32>
    %237 = arith.mulf %232, %236 : vector<1x6xf32>
    %238 = vector.extract_strided_slice %194 {offsets = [1, 0], sizes = [1, 24], strides = [1, 1]} : vector<5x24xf32> to vector<1x24xf32>
    %239 = vector.extract_strided_slice %237 {offsets = [0, 0], sizes = [1, 1], strides = [1, 1]} : vector<1x6xf32> to vector<1x1xf32>
    %240 = vector.broadcast %239 : vector<1x1xf32> to vector<1x24xf32>
    %241 = arith.mulf %240, %3 : vector<1x24xf32>
    %242 = arith.addf %238, %241 : vector<1x24xf32>
    %243 = vector.extract_strided_slice %237 {offsets = [0, 1], sizes = [1, 1], strides = [1, 1]} : vector<1x6xf32> to vector<1x1xf32>
    %244 = vector.broadcast %243 : vector<1x1xf32> to vector<1x24xf32>
    %245 = arith.mulf %244, %4 : vector<1x24xf32>
    %246 = arith.addf %242, %245 : vector<1x24xf32>
    %247 = vector.extract_strided_slice %237 {offsets = [0, 2], sizes = [1, 1], strides = [1, 1]} : vector<1x6xf32> to vector<1x1xf32>
    %248 = vector.broadcast %247 : vector<1x1xf32> to vector<1x24xf32>
    %249 = arith.mulf %248, %5 : vector<1x24xf32>
    %250 = arith.addf %246, %249 : vector<1x24xf32>
    %251 = vector.extract_strided_slice %237 {offsets = [0, 3], sizes = [1, 1], strides = [1, 1]} : vector<1x6xf32> to vector<1x1xf32>
    %252 = vector.broadcast %251 : vector<1x1xf32> to vector<1x24xf32>
    %253 = arith.mulf %252, %6 : vector<1x24xf32>
    %254 = arith.addf %250, %253 : vector<1x24xf32>
    %255 = vector.extract_strided_slice %237 {offsets = [0, 4], sizes = [1, 1], strides = [1, 1]} : vector<1x6xf32> to vector<1x1xf32>
    %256 = vector.broadcast %255 : vector<1x1xf32> to vector<1x24xf32>
    %257 = arith.mulf %256, %7 : vector<1x24xf32>
    %258 = arith.addf %254, %257 : vector<1x24xf32>
    %259 = vector.extract_strided_slice %237 {offsets = [0, 5], sizes = [1, 1], strides = [1, 1]} : vector<1x6xf32> to vector<1x1xf32>
    %260 = vector.broadcast %259 : vector<1x1xf32> to vector<1x24xf32>
    %261 = arith.mulf %260, %8 : vector<1x24xf32>
    %262 = arith.addf %258, %261 : vector<1x24xf32>
    %263 = vector.extract_strided_slice %262 {offsets = [0, 0], sizes = [1, 18], strides = [1, 1]} : vector<1x24xf32> to vector<1x18xf32>
    %264 = arith.negf %263 : vector<1x18xf32>
    %265 = math.exp %264 : vector<1x18xf32>
    %cst_40 = arith.constant 1.000000e+00 : f32
    %266 = vector.broadcast %cst_40 : f32 to vector<1x18xf32>
    %267 = arith.addf %266, %265 : vector<1x18xf32>
    %268 = arith.divf %266, %267 : vector<1x18xf32>
    %269 = vector.extract_strided_slice %262 {offsets = [0, 18], sizes = [1, 6], strides = [1, 1]} : vector<1x24xf32> to vector<1x6xf32>
    %270 = math.tanh %269 : vector<1x6xf32>
    %271 = vector.extract_strided_slice %268 {offsets = [0, 0], sizes = [1, 6], strides = [1, 1]} : vector<1x18xf32> to vector<1x6xf32>
    %272 = vector.extract_strided_slice %268 {offsets = [0, 6], sizes = [1, 6], strides = [1, 1]} : vector<1x18xf32> to vector<1x6xf32>
    %273 = vector.extract_strided_slice %268 {offsets = [0, 12], sizes = [1, 6], strides = [1, 1]} : vector<1x18xf32> to vector<1x6xf32>
    %274 = arith.mulf %272, %235 : vector<1x6xf32>
    %275 = arith.mulf %271, %270 : vector<1x6xf32>
    %276 = arith.addf %274, %275 : vector<1x6xf32>
    %277 = math.tanh %276 : vector<1x6xf32>
    %278 = arith.mulf %273, %277 : vector<1x6xf32>
    %279 = vector.extract_strided_slice %194 {offsets = [2, 0], sizes = [1, 24], strides = [1, 1]} : vector<5x24xf32> to vector<1x24xf32>
    %280 = vector.extract_strided_slice %278 {offsets = [0, 0], sizes = [1, 1], strides = [1, 1]} : vector<1x6xf32> to vector<1x1xf32>
    %281 = vector.broadcast %280 : vector<1x1xf32> to vector<1x24xf32>
    %282 = arith.mulf %281, %3 : vector<1x24xf32>
    %283 = arith.addf %279, %282 : vector<1x24xf32>
    %284 = vector.extract_strided_slice %278 {offsets = [0, 1], sizes = [1, 1], strides = [1, 1]} : vector<1x6xf32> to vector<1x1xf32>
    %285 = vector.broadcast %284 : vector<1x1xf32> to vector<1x24xf32>
    %286 = arith.mulf %285, %4 : vector<1x24xf32>
    %287 = arith.addf %283, %286 : vector<1x24xf32>
    %288 = vector.extract_strided_slice %278 {offsets = [0, 2], sizes = [1, 1], strides = [1, 1]} : vector<1x6xf32> to vector<1x1xf32>
    %289 = vector.broadcast %288 : vector<1x1xf32> to vector<1x24xf32>
    %290 = arith.mulf %289, %5 : vector<1x24xf32>
    %291 = arith.addf %287, %290 : vector<1x24xf32>
    %292 = vector.extract_strided_slice %278 {offsets = [0, 3], sizes = [1, 1], strides = [1, 1]} : vector<1x6xf32> to vector<1x1xf32>
    %293 = vector.broadcast %292 : vector<1x1xf32> to vector<1x24xf32>
    %294 = arith.mulf %293, %6 : vector<1x24xf32>
    %295 = arith.addf %291, %294 : vector<1x24xf32>
    %296 = vector.extract_strided_slice %278 {offsets = [0, 4], sizes = [1, 1], strides = [1, 1]} : vector<1x6xf32> to vector<1x1xf32>
    %297 = vector.broadcast %296 : vector<1x1xf32> to vector<1x24xf32>
    %298 = arith.mulf %297, %7 : vector<1x24xf32>
    %299 = arith.addf %295, %298 : vector<1x24xf32>
    %300 = vector.extract_strided_slice %278 {offsets = [0, 5], sizes = [1, 1], strides = [1, 1]} : vector<1x6xf32> to vector<1x1xf32>
    %301 = vector.broadcast %300 : vector<1x1xf32> to vector<1x24xf32>
    %302 = arith.mulf %301, %8 : vector<1x24xf32>
    %303 = arith.addf %299, %302 : vector<1x24xf32>
    %304 = vector.extract_strided_slice %303 {offsets = [0, 0], sizes = [1, 18], strides = [1, 1]} : vector<1x24xf32> to vector<1x18xf32>
    %305 = arith.negf %304 : vector<1x18xf32>
    %306 = math.exp %305 : vector<1x18xf32>
    %cst_41 = arith.constant 1.000000e+00 : f32
    %307 = vector.broadcast %cst_41 : f32 to vector<1x18xf32>
    %308 = arith.addf %307, %306 : vector<1x18xf32>
    %309 = arith.divf %307, %308 : vector<1x18xf32>
    %310 = vector.extract_strided_slice %303 {offsets = [0, 18], sizes = [1, 6], strides = [1, 1]} : vector<1x24xf32> to vector<1x6xf32>
    %311 = math.tanh %310 : vector<1x6xf32>
    %312 = vector.extract_strided_slice %309 {offsets = [0, 0], sizes = [1, 6], strides = [1, 1]} : vector<1x18xf32> to vector<1x6xf32>
    %313 = vector.extract_strided_slice %309 {offsets = [0, 6], sizes = [1, 6], strides = [1, 1]} : vector<1x18xf32> to vector<1x6xf32>
    %314 = vector.extract_strided_slice %309 {offsets = [0, 12], sizes = [1, 6], strides = [1, 1]} : vector<1x18xf32> to vector<1x6xf32>
    %315 = arith.mulf %313, %276 : vector<1x6xf32>
    %316 = arith.mulf %312, %311 : vector<1x6xf32>
    %317 = arith.addf %315, %316 : vector<1x6xf32>
    %318 = math.tanh %317 : vector<1x6xf32>
    %319 = arith.mulf %314, %318 : vector<1x6xf32>
    %320 = vector.extract_strided_slice %194 {offsets = [3, 0], sizes = [1, 24], strides = [1, 1]} : vector<5x24xf32> to vector<1x24xf32>
    %321 = vector.extract_strided_slice %319 {offsets = [0, 0], sizes = [1, 1], strides = [1, 1]} : vector<1x6xf32> to vector<1x1xf32>
    %322 = vector.broadcast %321 : vector<1x1xf32> to vector<1x24xf32>
    %323 = arith.mulf %322, %3 : vector<1x24xf32>
    %324 = arith.addf %320, %323 : vector<1x24xf32>
    %325 = vector.extract_strided_slice %319 {offsets = [0, 1], sizes = [1, 1], strides = [1, 1]} : vector<1x6xf32> to vector<1x1xf32>
    %326 = vector.broadcast %325 : vector<1x1xf32> to vector<1x24xf32>
    %327 = arith.mulf %326, %4 : vector<1x24xf32>
    %328 = arith.addf %324, %327 : vector<1x24xf32>
    %329 = vector.extract_strided_slice %319 {offsets = [0, 2], sizes = [1, 1], strides = [1, 1]} : vector<1x6xf32> to vector<1x1xf32>
    %330 = vector.broadcast %329 : vector<1x1xf32> to vector<1x24xf32>
    %331 = arith.mulf %330, %5 : vector<1x24xf32>
    %332 = arith.addf %328, %331 : vector<1x24xf32>
    %333 = vector.extract_strided_slice %319 {offsets = [0, 3], sizes = [1, 1], strides = [1, 1]} : vector<1x6xf32> to vector<1x1xf32>
    %334 = vector.broadcast %333 : vector<1x1xf32> to vector<1x24xf32>
    %335 = arith.mulf %334, %6 : vector<1x24xf32>
    %336 = arith.addf %332, %335 : vector<1x24xf32>
    %337 = vector.extract_strided_slice %319 {offsets = [0, 4], sizes = [1, 1], strides = [1, 1]} : vector<1x6xf32> to vector<1x1xf32>
    %338 = vector.broadcast %337 : vector<1x1xf32> to vector<1x24xf32>
    %339 = arith.mulf %338, %7 : vector<1x24xf32>
    %340 = arith.addf %336, %339 : vector<1x24xf32>
    %341 = vector.extract_strided_slice %319 {offsets = [0, 5], sizes = [1, 1], strides = [1, 1]} : vector<1x6xf32> to vector<1x1xf32>
    %342 = vector.broadcast %341 : vector<1x1xf32> to vector<1x24xf32>
    %343 = arith.mulf %342, %8 : vector<1x24xf32>
    %344 = arith.addf %340, %343 : vector<1x24xf32>
    %345 = vector.extract_strided_slice %344 {offsets = [0, 0], sizes = [1, 18], strides = [1, 1]} : vector<1x24xf32> to vector<1x18xf32>
    %346 = arith.negf %345 : vector<1x18xf32>
    %347 = math.exp %346 : vector<1x18xf32>
    %cst_42 = arith.constant 1.000000e+00 : f32
    %348 = vector.broadcast %cst_42 : f32 to vector<1x18xf32>
    %349 = arith.addf %348, %347 : vector<1x18xf32>
    %350 = arith.divf %348, %349 : vector<1x18xf32>
    %351 = vector.extract_strided_slice %344 {offsets = [0, 18], sizes = [1, 6], strides = [1, 1]} : vector<1x24xf32> to vector<1x6xf32>
    %352 = math.tanh %351 : vector<1x6xf32>
    %353 = vector.extract_strided_slice %350 {offsets = [0, 0], sizes = [1, 6], strides = [1, 1]} : vector<1x18xf32> to vector<1x6xf32>
    %354 = vector.extract_strided_slice %350 {offsets = [0, 6], sizes = [1, 6], strides = [1, 1]} : vector<1x18xf32> to vector<1x6xf32>
    %355 = vector.extract_strided_slice %350 {offsets = [0, 12], sizes = [1, 6], strides = [1, 1]} : vector<1x18xf32> to vector<1x6xf32>
    %356 = arith.mulf %354, %317 : vector<1x6xf32>
    %357 = arith.mulf %353, %352 : vector<1x6xf32>
    %358 = arith.addf %356, %357 : vector<1x6xf32>
    %359 = math.tanh %358 : vector<1x6xf32>
    %360 = arith.mulf %355, %359 : vector<1x6xf32>
    %361 = vector.extract_strided_slice %194 {offsets = [4, 0], sizes = [1, 24], strides = [1, 1]} : vector<5x24xf32> to vector<1x24xf32>
    %362 = vector.extract_strided_slice %360 {offsets = [0, 0], sizes = [1, 1], strides = [1, 1]} : vector<1x6xf32> to vector<1x1xf32>
    %363 = vector.broadcast %362 : vector<1x1xf32> to vector<1x24xf32>
    %364 = arith.mulf %363, %3 : vector<1x24xf32>
    %365 = arith.addf %361, %364 : vector<1x24xf32>
    %366 = vector.extract_strided_slice %360 {offsets = [0, 1], sizes = [1, 1], strides = [1, 1]} : vector<1x6xf32> to vector<1x1xf32>
    %367 = vector.broadcast %366 : vector<1x1xf32> to vector<1x24xf32>
    %368 = arith.mulf %367, %4 : vector<1x24xf32>
    %369 = arith.addf %365, %368 : vector<1x24xf32>
    %370 = vector.extract_strided_slice %360 {offsets = [0, 2], sizes = [1, 1], strides = [1, 1]} : vector<1x6xf32> to vector<1x1xf32>
    %371 = vector.broadcast %370 : vector<1x1xf32> to vector<1x24xf32>
    %372 = arith.mulf %371, %5 : vector<1x24xf32>
    %373 = arith.addf %369, %372 : vector<1x24xf32>
    %374 = vector.extract_strided_slice %360 {offsets = [0, 3], sizes = [1, 1], strides = [1, 1]} : vector<1x6xf32> to vector<1x1xf32>
    %375 = vector.broadcast %374 : vector<1x1xf32> to vector<1x24xf32>
    %376 = arith.mulf %375, %6 : vector<1x24xf32>
    %377 = arith.addf %373, %376 : vector<1x24xf32>
    %378 = vector.extract_strided_slice %360 {offsets = [0, 4], sizes = [1, 1], strides = [1, 1]} : vector<1x6xf32> to vector<1x1xf32>
    %379 = vector.broadcast %378 : vector<1x1xf32> to vector<1x24xf32>
    %380 = arith.mulf %379, %7 : vector<1x24xf32>
    %381 = arith.addf %377, %380 : vector<1x24xf32>
    %382 = vector.extract_strided_slice %360 {offsets = [0, 5], sizes = [1, 1], strides = [1, 1]} : vector<1x6xf32> to vector<1x1xf32>
    %383 = vector.broadcast %382 : vector<1x1xf32> to vector<1x24xf32>
    %384 = arith.mulf %383, %8 : vector<1x24xf32>
    %385 = arith.addf %381, %384 : vector<1x24xf32>
    %386 = vector.extract_strided_slice %385 {offsets = [0, 0], sizes = [1, 18], strides = [1, 1]} : vector<1x24xf32> to vector<1x18xf32>
    %387 = arith.negf %386 : vector<1x18xf32>
    %388 = math.exp %387 : vector<1x18xf32>
    %cst_43 = arith.constant 1.000000e+00 : f32
    %389 = vector.broadcast %cst_43 : f32 to vector<1x18xf32>
    %390 = arith.addf %389, %388 : vector<1x18xf32>
    %391 = arith.divf %389, %390 : vector<1x18xf32>
    %392 = vector.extract_strided_slice %385 {offsets = [0, 18], sizes = [1, 6], strides = [1, 1]} : vector<1x24xf32> to vector<1x6xf32>
    %393 = math.tanh %392 : vector<1x6xf32>
    %394 = vector.extract_strided_slice %391 {offsets = [0, 0], sizes = [1, 6], strides = [1, 1]} : vector<1x18xf32> to vector<1x6xf32>
    %395 = vector.extract_strided_slice %391 {offsets = [0, 6], sizes = [1, 6], strides = [1, 1]} : vector<1x18xf32> to vector<1x6xf32>
    %396 = vector.extract_strided_slice %391 {offsets = [0, 12], sizes = [1, 6], strides = [1, 1]} : vector<1x18xf32> to vector<1x6xf32>
    %397 = arith.mulf %395, %358 : vector<1x6xf32>
    %398 = arith.mulf %394, %393 : vector<1x6xf32>
    %399 = arith.addf %397, %398 : vector<1x6xf32>
    %400 = math.tanh %399 : vector<1x6xf32>
    %401 = arith.mulf %396, %400 : vector<1x6xf32>
    %402 = tpu.concatenate %237, %278, %319, %360, %401 in 0 : vector<1x6xf32>, vector<1x6xf32>, vector<1x6xf32>, vector<1x6xf32>, vector<1x6xf32> -> vector<5x6xf32>
    %c12 = arith.constant 12 : index
    %c0_44 = arith.constant 0 : index
    %403 = vector.load %arg2[%c12, %c0_44] : memref<29x24xf32, #tpu.memory_space<vmem>>, vector<6x3xf32>
    %c18 = arith.constant 18 : index
    %c0_45 = arith.constant 0 : index
    %404 = vector.load %arg2[%c18, %c0_45] : memref<29x24xf32, #tpu.memory_space<vmem>>, vector<1x3xf32>
    %cst_46 = arith.constant dense<0.000000e+00> : vector<5x3xf32>
    %405 = tpu.matmul %402, %403, %cst_46 {dimension_numbers = #tpu.dot_dimension_numbers<[1], [0], [0], [1], [0, 0, 1, 1], [], []>} : vector<5x6xf32>, vector<6x3xf32>, vector<5x3xf32> -> vector<5x3xf32>
    %406 = vector.broadcast %404 : vector<1x3xf32> to vector<5x3xf32>
    %407 = arith.addf %405, %406 : vector<5x3xf32>
    %cst_47 = arith.constant dense<0xFF800000> : vector<5xf32>
    %408 = vector.multi_reduction <maximumf>, %407, %cst_47 [1] : vector<5x3xf32> to vector<5xf32>
    %409 = vector.shape_cast %408 : vector<5xf32> to vector<5x1xf32>
    %410 = vector.broadcast %409 : vector<5x1xf32> to vector<5x3xf32>
    %411 = arith.subf %407, %410 : vector<5x3xf32>
    %412 = math.exp %411 : vector<5x3xf32>
    %cst_48 = arith.constant dense<0.000000e+00> : vector<5xf32>
    %413 = vector.multi_reduction <add>, %412, %cst_48 [1] : vector<5x3xf32> to vector<5xf32>
    %414 = vector.shape_cast %413 : vector<5xf32> to vector<5x1xf32>
    %415 = math.log %414 : vector<5x1xf32>
    %416 = vector.broadcast %415 : vector<5x1xf32> to vector<5x3xf32>
    %417 = arith.subf %411, %416 : vector<5x3xf32>
    %c0_49 = arith.constant 0 : index
    %c0_50 = arith.constant 0 : index
    %418 = vector.load %arg3[%c0_49, %c0_50] : memref<5x3xf32, #tpu.memory_space<vmem>>, vector<5x3xf32>
    tpu.vector_store %arg3[%c0_49, %c0_50], %417 {strides = array<i32>} : memref<5x3xf32, #tpu.memory_space<vmem>>, vector<5x3xf32>,
    return
  }
  func.func @transform_0(%arg0: i32) -> (i32, i32, i32) {
    %c0_i32 = arith.constant 0 : i32
    %c0_i32_0 = arith.constant 0 : i32
    %c0_i32_1 = arith.constant 0 : i32
    %c0_i32_2 = arith.constant 0 : i32
    return %c0_i32, %c0_i32_0, %c0_i32_1 : i32, i32, i32
  }
  func.func @transform_1(%arg0: i32) -> (i32, i32) {
    %c0_i32 = arith.constant 0 : i32
    %c0_i32_0 = arith.constant 0 : i32
    %c0_i32_1 = arith.constant 0 : i32
    return %c0_i32, %c0_i32_0 : i32, i32
  }
  func.func @transform_2(%arg0: i32) -> (i32, i32) {
    %c0_i32 = arith.constant 0 : i32
    %c0_i32_0 = arith.constant 0 : i32
    %c0_i32_1 = arith.constant 0 : i32
    return %c0_i32, %c0_i32_0 : i32, i32
  }
}

</mosaic_0001>

<llo_original>
// kernel: lstm_tagger_forward.1
$region0: #{lstm_tagger_forward.1}
  #allocation0 [shape = 'u32[]', space=smem, size = 0x4, offset = 0x4, fixed_abs, tag = 'smem constant byte address 0x4 - core index']
  #allocation1 [shape = 'u32[72,128]{1,0:T(1,128)}', space=vmem, size = 0x9000, scoped, tag = 'internal scratch']
  %s0 = inlined_call_operand.vmem [shape: f32[5,5,12], index: 0, kind: input, shape index: {}]
  %s1 = inlined_call_operand.vmem [shape: f32[29,24], index: 1, kind: input, shape index: {}]
  %s2 = inlined_call_operand.vmem [shape: f32[5,3], index: 2, kind: output, shape index: {}]
  %s3 = sld [smem:[#allocation0]]
  $region18: #{lstm_tagger_forward.1} parent=0
    _
  %s5 = ssub.s32 1, %s3
  %s6 = scalar_select 0, %s5, %s3
  // Predicated region
  $region2: #{lstm_tagger_forward.1} parent=0 // pred_check
    _
  $region3: #{lstm_tagger_forward.1} parent=0 // pred_check_branch
    %8 = sbr.rel (0) target = $region5
  $region4: #{lstm_tagger_forward.1} parent=0 // pred_region
    _
  $region5: #{lstm_tagger_forward.1} parent=0 // pred_fallthru
    _
  // Predicated region
  $region6: #{lstm_tagger_forward.1} parent=0 // pred_check
    _
  $region7: #{lstm_tagger_forward.1} parent=0 // pred_check_branch
    %10 = sbr.rel (0) target = $region9
  $region8: #{lstm_tagger_forward.1} parent=0 // pred_region
    _
  $region9: #{lstm_tagger_forward.1} parent=0 // pred_fallthru
    _
  %v11 = vld [vmem:[%s1] sm:$0x1]
  %v12 = vld [vmem:[%s1 + $0x1] sm:$0x1]
  %v13 = vld [vmem:[%s1 + $0x2] sm:$0x1]
  %v14 = vld [vmem:[%s1 + $0x6] sm:$0x1]
  %v15 = vld [vmem:[%s1 + $0x7] sm:$0x1]
  %v16 = vld [vmem:[%s1 + $0x8] sm:$0x1]
  %v17 = vld [vmem:[%s1 + $0x9] sm:$0x1]
  %v18 = vld [vmem:[%s1 + $0xa] sm:$0x1]
  %v19 = vld [vmem:[%s1 + $0xb] sm:$0x1]
  %v20 = vld [vmem:[%s1 + $0x18] sm:$0x1f]
  %vm21 = vcmp.gt.f32.partialorder %v20, 0.5
  %v22 = vld [vmem:[%s0] sm:$0x1f]
  %v23 = vperm.slane %v11, 0
  %v24 = vmul.f32 %v23, 0.0
  %v25 = vadd.f32 %v22, %v24
  %v26 = vperm.slane %v12, 0
  %v27 = vmul.f32 %v26, 0.0
  %v28 = vadd.f32 %v25, %v27
  %v29 = vperm.slane %v13, 0
  %v30 = vmul.f32 %v29, 0.0
  %v31 = vadd.f32 %v28, %v30
  %v32 = vxor.u32 %v31, 2147483648
  %v33 = vmul.f32 %v32, 1.442695
  %v34 = vpow.pop %v33
  %v35 = vadd.f32 %v34, 1.0
  %v36 = vrcp.pop %v35
  %v37 = vmul.f32 %v35, %v36
  %v38 = vsub.f32 1.0, %v37
  %v39 = vmul.f32 %v36, %v38
  %v40 = vadd.f32 %v36, %v39
  %vm41 = vweird.f32 %v35
  %vm42 = vweird.f32 %v36
  %vm43 = vmor %vm41, %vm42
  %v44 = vsel %vm43, %v36, %v40
  %v45 = vand.u32 2147483647, %v35
  %vm46 = vcmp.eq.f32.partialorder %v45, 8.507059e+37
  %v47 = vand.u32 %v35, 2147483648
  %v48 = vor.u32 1.1754944e-38, %v47
  %v49 = vsel %vm46, %v48, %v44
  %v50 = vmul.f32 1.0, %v49
  %v51 = vtanh.pop %v31
  %v52 = vmul.f32 %v50, 0.0
  %54 = vrot.lane.b32.xlu0 %v51, 119
  %v55 = vpop.permute.xlu0 %54
  %v57 = vmul.f32 %v50, %v55
  %59 = vrot.lane.b32.xlu0 %v57, 3
  %v60 = vpop.permute.xlu0 %59
  %v62 = vadd.f32 %v52, %v60
  %v63 = vtanh.pop %v62
  %65 = vrot.lane.b32.xlu0 %v63, 3
  %v66 = vpop.permute.xlu0 %65
  %v68 = vmul.f32 %v50, %v66
  %s69 = scalar_lea.vmem %s0, 8
  %v70 = vld [vmem:[%s69] sm:$0x1f]
  %72 = vset.pattern.permute.xlu0 6
  %73 = vperm.xlu0 %72, %v68
  %v74 = vpop.permute.xlu0 %73
  %v76 = vmul.f32 %v74, %v23
  %v77 = vadd.f32 %v70, %v76
  %78 = vset.pattern.permute.xlu0 7
  %79 = vperm.xlu0 %78, %v68
  %v80 = vpop.permute.xlu0 %79
  %v82 = vmul.f32 %v80, %v26
  %v83 = vadd.f32 %v77, %v82
  %84 = vset.pattern.permute.xlu0 8
  %85 = vperm.xlu0 %84, %v68
  %v86 = vpop.permute.xlu0 %85
  %v88 = vmul.f32 %v86, %v29
  %v89 = vadd.f32 %v83, %v88
  %v90 = vxor.u32 %v89, 2147483648
  %v91 = vmul.f32 %v90, 1.442695
  %v92 = vpow.pop %v91
  %v93 = vadd.f32 %v92, 1.0
  %v94 = vrcp.pop %v93
  %v95 = vmul.f32 %v93, %v94
  %v96 = vsub.f32 1.0, %v95
  %v97 = vmul.f32 %v94, %v96
  %v98 = vadd.f32 %v94, %v97
  %vm99 = vweird.f32 %v93
  %vm100 = vweird.f32 %v94
  %vm101 = vmor %vm99, %vm100
  %v102 = vsel %vm101, %v94, %v98
  %v103 = vand.u32 2147483647, %v93
  %vm104 = vcmp.eq.f32.partialorder %v103, 8.507059e+37
  %v105 = vand.u32 %v93, 2147483648
  %v106 = vor.u32 1.1754944e-38, %v105
  %v107 = vsel %vm104, %v106, %v102
  %v108 = vmul.f32 1.0, %v107
  %v109 = vtanh.pop %v89
  %v110 = vmul.f32 %v108, %v62
  %112 = vrot.lane.b32.xlu0 %v109, 119
  %v113 = vpop.permute.xlu0 %112
  %v115 = vmul.f32 %v108, %v113
  %117 = vrot.lane.b32.xlu0 %v115, 3
  %v118 = vpop.permute.xlu0 %117
  %v120 = vadd.f32 %v110, %v118
  %v121 = vtanh.pop %v120
  %123 = vrot.lane.b32.xlu0 %v121, 3
  %v124 = vpop.permute.xlu0 %123
  %v126 = vmul.f32 %v108, %v124
  %s127 = scalar_lea.vmem %s0, 16
  %v128 = vld [vmem:[%s127] sm:$0x1f]
  %130 = vset.pattern.permute.xlu0 6
  %131 = vperm.xlu0 %130, %v126
  %v132 = vpop.permute.xlu0 %131
  %v134 = vmul.f32 %v132, %v23
  %v135 = vadd.f32 %v128, %v134
  %136 = vset.pattern.permute.xlu0 7
  %137 = vperm.xlu0 %136, %v126
  %v138 = vpop.permute.xlu0 %137
  %v140 = vmul.f32 %v138, %v26
  %v141 = vadd.f32 %v135, %v140
  %142 = vset.pattern.permute.xlu0 8
  %143 = vperm.xlu0 %142, %v126
  %v144 = vpop.permute.xlu0 %143
  %v146 = vmul.f32 %v144, %v29
  %v147 = vadd.f32 %v141, %v146
  %v148 = vxor.u32 %v147, 2147483648
  %v149 = vmul.f32 %v148, 1.442695
  %v150 = vpow.pop %v149
  %v151 = vadd.f32 %v150, 1.0
  %v152 = vrcp.pop %v151
  %v153 = vmul.f32 %v151, %v152
  %v154 = vsub.f32 1.0, %v153
  %v155 = vmul.f32 %v152, %v154
  %v156 = vadd.f32 %v152, %v155
  %vm157 = vweird.f32 %v151
  %vm158 = vweird.f32 %v152
  %vm159 = vmor %vm157, %vm158
  %v160 = vsel %vm159, %v152, %v156
  %v161 = vand.u32 2147483647, %v151
  %vm162 = vcmp.eq.f32.partialorder %v161, 8.507059e+37
  %v163 = vand.u32 %v151, 2147483648
  %v164 = vor.u32 1.1754944e-38, %v163
  %v165 = vsel %vm162, %v164, %v160
  %v166 = vmul.f32 1.0, %v165
  %v167 = vtanh.pop %v147
  %v168 = vmul.f32 %v166, %v120
  %170 = vrot.lane.b32.xlu0 %v167, 119
  %v171 = vpop.permute.xlu0 %170
  %v173 = vmul.f32 %v166, %v171
  %175 = vrot.lane.b32.xlu0 %v173, 3
  %v176 = vpop.permute.xlu0 %175
  %v178 = vadd.f32 %v168, %v176
  %v179 = vtanh.pop %v178
  %181 = vrot.lane.b32.xlu0 %v179, 3
  %v182 = vpop.permute.xlu0 %181
  %v184 = vmul.f32 %v166, %v182
  %s185 = scalar_lea.vmem %s0, 24
  %v186 = vld [vmem:[%s185] sm:$0x1f]
  %188 = vset.pattern.permute.xlu0 6
  %189 = vperm.xlu0 %188, %v184
  %v190 = vpop.permute.xlu0 %189
  %v192 = vmul.f32 %v190, %v23
  %v193 = vadd.f32 %v186, %v192
  %194 = vset.pattern.permute.xlu0 7
  %195 = vperm.xlu0 %194, %v184
  %v196 = vpop.permute.xlu0 %195
  %v198 = vmul.f32 %v196, %v26
  %v199 = vadd.f32 %v193, %v198
  %200 = vset.pattern.permute.xlu0 8
  %201 = vperm.xlu0 %200, %v184
  %v202 = vpop.permute.xlu0 %201
  %v204 = vmul.f32 %v202, %v29
  %v205 = vadd.f32 %v199, %v204
  %v206 = vxor.u32 %v205, 2147483648
  %v207 = vmul.f32 %v206, 1.442695
  %v208 = vpow.pop %v207
  %v209 = vadd.f32 %v208, 1.0
  %v210 = vrcp.pop %v209
  %v211 = vmul.f32 %v209, %v210
  %v212 = vsub.f32 1.0, %v211
  %v213 = vmul.f32 %v210, %v212
  %v214 = vadd.f32 %v210, %v213
  %vm215 = vweird.f32 %v209
  %vm216 = vweird.f32 %v210
  %vm217 = vmor %vm215, %vm216
  %v218 = vsel %vm217, %v210, %v214
  %v219 = vand.u32 2147483647, %v209
  %vm220 = vcmp.eq.f32.partialorder %v219, 8.507059e+37
  %v221 = vand.u32 %v209, 2147483648
  %v222 = vor.u32 1.1754944e-38, %v221
  %v223 = vsel %vm220, %v222, %v218
  %v224 = vmul.f32 1.0, %v223
  %v225 = vtanh.pop %v205
  %v226 = vmul.f32 %v224, %v178
  %228 = vrot.lane.b32.xlu0 %v225, 119
  %v229 = vpop.permute.xlu0 %228
  %v231 = vmul.f32 %v224, %v229
  %233 = vrot.lane.b32.xlu0 %v231, 3
  %v234 = vpop.permute.xlu0 %233
  %v236 = vadd.f32 %v226, %v234
  %v237 = vtanh.pop %v236
  %239 = vrot.lane.b32.xlu0 %v237, 3
  %v240 = vpop.permute.xlu0 %239
  %v242 = vmul.f32 %v224, %v240
  %v243 = vsel %vm21, 1, 0
  %244 = vset.pattern.permute.xlu0 3
  %245 = vperm.xlu0 %244, %v243
  %v246 = vpop.permute.xlu0 %245
  %vm247 = vcmp.eq.s32.totalorder %v246, 1
  %v248 = vsel %vm247, %v242, %v184
  %v249 = vsel %vm247, %v236, %v178
  %s250 = scalar_lea.vmem %s0, 32
  %v251 = vld [vmem:[%s250] sm:$0x1f]
  %253 = vset.pattern.permute.xlu0 6
  %254 = vperm.xlu0 %253, %v248
  %v255 = vpop.permute.xlu0 %254
  %v257 = vmul.f32 %v255, %v23
  %v258 = vadd.f32 %v251, %v257
  %259 = vset.pattern.permute.xlu0 7
  %260 = vperm.xlu0 %259, %v248
  %v261 = vpop.permute.xlu0 %260
  %v263 = vmul.f32 %v261, %v26
  %v264 = vadd.f32 %v258, %v263
  %265 = vset.pattern.permute.xlu0 8
  %266 = vperm.xlu0 %265, %v248
  %v267 = vpop.permute.xlu0 %266
  %v269 = vmul.f32 %v267, %v29
  %v270 = vadd.f32 %v264, %v269
  %v271 = vxor.u32 %v270, 2147483648
  %v272 = vmul.f32 %v271, 1.442695
  %v273 = vpow.pop %v272
  %v274 = vadd.f32 %v273, 1.0
  %v275 = vrcp.pop %v274
  %v276 = vmul.f32 %v274, %v275
  %v277 = vsub.f32 1.0, %v276
  %v278 = vmul.f32 %v275, %v277
  %v279 = vadd.f32 %v275, %v278
  %vm280 = vweird.f32 %v274
  %vm281 = vweird.f32 %v275
  %vm282 = vmor %vm280, %vm281
  %v283 = vsel %vm282, %v275, %v279
  %v284 = vand.u32 2147483647, %v274
  %vm285 = vcmp.eq.f32.partialorder %v284, 8.507059e+37
  %v286 = vand.u32 %v274, 2147483648
  %v287 = vor.u32 1.1754944e-38, %v286
  %v288 = vsel %vm285, %v287, %v283
  %v289 = vmul.f32 1.0, %v288
  %v290 = vtanh.pop %v270
  %v291 = vmul.f32 %v289, %v249
  %293 = vrot.lane.b32.xlu0 %v290, 119
  %v294 = vpop.permute.xlu0 %293
  %v296 = vmul.f32 %v289, %v294
  %298 = vrot.lane.b32.xlu0 %v296, 3
  %v299 = vpop.permute.xlu0 %298
  %v301 = vadd.f32 %v291, %v299
  %v302 = vtanh.pop %v301
  %304 = vrot.lane.b32.xlu0 %v302, 3
  %v305 = vpop.permute.xlu0 %304
  %v307 = vmul.f32 %v289, %v305
  %308 = vset.pattern.permute.xlu0 4
  %309 = vperm.xlu0 %308, %v243
  %v310 = vpop.permute.xlu0 %309
  %vm311 = vcmp.eq.s32.totalorder %v310, 1
  %v312 = vsel %vm311, %v307, %v248
  %v313 = vld [vmem:[%s1 + $0x3] sm:$0x7]
  %v314 = vld [vmem:[%s1 + $0x13] sm:$0x1f]
  %316 = vrot.lane.b32.xlu0 %v312, 122
  %v317 = vpop.permute.xlu0 %316
  %vm318 = vcmask 23552
  %v319 = vsel %vm318, %v317, 0
  %vm321 = vcmask 1042432
  %v323 = vsel %vm321, %v313, 0
  %325 = vmatpush.msra.mxu0 0.0
  %326 = vmatpush.msra.mxu0 0.0
  %327 = vmatpush.msra.mxu0 0.0
  %328 = vmatpush.msra.mxu0 0.0
  %329 = vmatpush.msra.mxu0 0.0
  %330 = vmatpush.msra.mxu0 0.0
  %331 = vmatpush.msra.mxu0 0.0
  %332 = vmatpush.msra.mxu0 0.0
  %333 = vmatpush.msra.mxu0 0.0
  %334 = vmatpush.msra.mxu0 0.0
  %335 = vmatpush.msra.mxu0 0.0
  %336 = vmatpush.msra.mxu0 0.0
  %337 = vmatpush.msra.mxu0 0.0
  %338 = vmatpush.msra.mxu0 0.0
  %339 = vmatpush.msra.mxu0 0.0
  %340 = vmatpush.msra.mxu0 %v323
  %341 = vmatmul.f32.gmra.mxu0 %v319
  %v342 = vpop.f32.mrf.mxu0
  %v343 = vadd.f32 0.0, %v342
  %344 = vdwg.mxu0
  %v345 = vadd.f32 %v314, %v343
  %v346 = vmul.f32 %v14, 0.0
  %v347 = vadd.f32 %v345, %v346
  %v348 = vmul.f32 %v15, 0.0
  %v349 = vadd.f32 %v347, %v348
  %v350 = vmul.f32 %v16, 0.0
  %v351 = vadd.f32 %v349, %v350
  %v352 = vmul.f32 %v17, 0.0
  %v353 = vadd.f32 %v351, %v352
  %v354 = vmul.f32 %v18, 0.0
  %v355 = vadd.f32 %v353, %v354
  %v356 = vmul.f32 %v19, 0.0
  %v357 = vadd.f32 %v355, %v356
  %v358 = vxor.u32 %v357, 2147483648
  %v359 = vmul.f32 %v358, 1.442695
  %v360 = vpow.pop %v359
  %v361 = vadd.f32 %v360, 1.0
  %v362 = vrcp.pop %v361
  %v363 = vmul.f32 %v361, %v362
  %v364 = vsub.f32 1.0, %v363
  %v365 = vmul.f32 %v362, %v364
  %v366 = vadd.f32 %v362, %v365
  %vm367 = vweird.f32 %v361
  %vm368 = vweird.f32 %v362
  %vm369 = vmor %vm367, %vm368
  %v370 = vsel %vm369, %v362, %v366
  %v371 = vand.u32 2147483647, %v361
  %vm372 = vcmp.eq.f32.partialorder %v371, 8.507059e+37
  %v373 = vand.u32 %v361, 2147483648
  %v374 = vor.u32 1.1754944e-38, %v373
  %v375 = vsel %vm372, %v374, %v370
  %v376 = vmul.f32 1.0, %v375
  %v377 = vtanh.pop %v357
  %v378 = vmul.f32 %v376, 0.0
  %380 = vrot.lane.b32.xlu0 %v377, 110
  %v381 = vpop.permute.xlu0 %380
  %v383 = vmul.f32 %v376, %v381
  %385 = vrot.lane.b32.xlu0 %v383, 6
  %v386 = vpop.permute.xlu0 %385
  %v388 = vadd.f32 %v378, %v386
  %v389 = vtanh.pop %v388
  %391 = vrot.lane.b32.xlu0 %v389, 6
  %v392 = vpop.permute.xlu0 %391
  %v394 = vmul.f32 %v376, %v392
  %396 = vset.pattern.permute.xlu0 12
  %397 = vperm.xlu0 %396, %v394
  %v398 = vpop.permute.xlu0 %397
  %v400 = vmul.f32 %v398, %v14
  %v402 = vrot.slane %v400, 7
  %v404 = vadd.f32 %v345, %v402
  %405 = vset.pattern.permute.xlu0 13
  %406 = vperm.xlu0 %405, %v394
  %v407 = vpop.permute.xlu0 %406
  %v409 = vmul.f32 %v407, %v15
  %v411 = vrot.slane %v409, 7
  %v413 = vadd.f32 %v404, %v411
  %414 = vset.pattern.permute.xlu0 14
  %415 = vperm.xlu0 %414, %v394
  %v416 = vpop.permute.xlu0 %415
  %v418 = vmul.f32 %v416, %v16
  %v420 = vrot.slane %v418, 7
  %v422 = vadd.f32 %v413, %v420
  %423 = vset.pattern.permute.xlu0 15
  %424 = vperm.xlu0 %423, %v394
  %v425 = vpop.permute.xlu0 %424
  %v427 = vmul.f32 %v425, %v17
  %v429 = vrot.slane %v427, 7
  %v431 = vadd.f32 %v422, %v429
  %432 = vset.pattern.permute.xlu0 16
  %433 = vperm.xlu0 %432, %v394
  %v434 = vpop.permute.xlu0 %433
  %v436 = vmul.f32 %v434, %v18
  %v438 = vrot.slane %v436, 7
  %v440 = vadd.f32 %v431, %v438
  %441 = vset.pattern.permute.xlu0 17
  %442 = vperm.xlu0 %441, %v394
  %v443 = vpop.permute.xlu0 %442
  %v445 = vmul.f32 %v443, %v19
  %v447 = vrot.slane %v445, 7
  %v449 = vadd.f32 %v440, %v447
  %v450 = vxor.u32 %v449, 2147483648
  %v451 = vmul.f32 %v450, 1.442695
  %v452 = vpow.pop %v451
  %v453 = vadd.f32 %v452, 1.0
  %v454 = vrcp.pop %v453
  %v455 = vmul.f32 %v453, %v454
  %v456 = vsub.f32 1.0, %v455
  %v457 = vmul.f32 %v454, %v456
  %v458 = vadd.f32 %v454, %v457
  %vm459 = vweird.f32 %v453
  %vm460 = vweird.f32 %v454
  %vm461 = vmor %vm459, %vm460
  %v462 = vsel %vm461, %v454, %v458
  %v463 = vand.u32 2147483647, %v453
  %vm464 = vcmp.eq.f32.partialorder %v463, 8.507059e+37
  %v465 = vand.u32 %v453, 2147483648
  %v466 = vor.u32 1.1754944e-38, %v465
  %v467 = vsel %vm464, %v466, %v462
  %v468 = vmul.f32 1.0, %v467
  %v469 = vtanh.pop %v449
  %v471 = vrot.slane %v388, 7
  %v473 = vmul.f32 %v468, %v471
  %475 = vrot.lane.b32.xlu0 %v469, 110
  %v476 = vpop.permute.xlu0 %475
  %v478 = vmul.f32 %v468, %v476
  %480 = vrot.lane.b32.xlu0 %v478, 6
  %v481 = vpop.permute.xlu0 %480
  %v483 = vadd.f32 %v473, %v481
  %v484 = vtanh.pop %v483
  %486 = vrot.lane.b32.xlu0 %v484, 6
  %v487 = vpop.permute.xlu0 %486
  %v489 = vmul.f32 %v468, %v487
  %491 = vset.pattern.permute.xlu0 12
  %492 = vperm.xlu0 %491, %v489
  %v493 = vpop.permute.xlu0 %492
  %v496 = vrot.slane %v14, 7
  %v498 = vmul.f32 %v493, %v496
  %v500 = vrot.slane %v498, 7
  %v502 = vadd.f32 %v345, %v500
  %503 = vset.pattern.permute.xlu0 13
  %504 = vperm.xlu0 %503, %v489
  %v505 = vpop.permute.xlu0 %504
  %v508 = vrot.slane %v15, 7
  %v510 = vmul.f32 %v505, %v508
  %v512 = vrot.slane %v510, 7
  %v514 = vadd.f32 %v502, %v512
  %515 = vset.pattern.permute.xlu0 14
  %516 = vperm.xlu0 %515, %v489
  %v517 = vpop.permute.xlu0 %516
  %v520 = vrot.slane %v16, 7
  %v522 = vmul.f32 %v517, %v520
  %v524 = vrot.slane %v522, 7
  %v526 = vadd.f32 %v514, %v524
  %527 = vset.pattern.permute.xlu0 15
  %528 = vperm.xlu0 %527, %v489
  %v529 = vpop.permute.xlu0 %528
  %v532 = vrot.slane %v17, 7
  %v534 = vmul.f32 %v529, %v532
  %v536 = vrot.slane %v534, 7
  %v538 = vadd.f32 %v526, %v536
  %539 = vset.pattern.permute.xlu0 16
  %540 = vperm.xlu0 %539, %v489
  %v541 = vpop.permute.xlu0 %540
  %v544 = vrot.slane %v18, 7
  %v546 = vmul.f32 %v541, %v544
  %v548 = vrot.slane %v546, 7
  %v550 = vadd.f32 %v538, %v548
  %551 = vset.pattern.permute.xlu0 17
  %552 = vperm.xlu0 %551, %v489
  %v553 = vpop.permute.xlu0 %552
  %v556 = vrot.slane %v19, 7
  %v558 = vmul.f32 %v553, %v556
  %v560 = vrot.slane %v558, 7
  %v562 = vadd.f32 %v550, %v560
  %v563 = vxor.u32 %v562, 2147483648
  %v564 = vmul.f32 %v563, 1.442695
  %v565 = vpow.pop %v564
  %v566 = vadd.f32 %v565, 1.0
  %v567 = vrcp.pop %v566
  %v568 = vmul.f32 %v566, %v567
  %v569 = vsub.f32 1.0, %v568
  %v570 = vmul.f32 %v567, %v569
  %v571 = vadd.f32 %v567, %v570
  %vm572 = vweird.f32 %v566
  %vm573 = vweird.f32 %v567
  %vm574 = vmor %vm572, %vm573
  %v575 = vsel %vm574, %v567, %v571
  %v576 = vand.u32 2147483647, %v566
  %vm577 = vcmp.eq.f32.partialorder %v576, 8.507059e+37
  %v578 = vand.u32 %v566, 2147483648
  %v579 = vor.u32 1.1754944e-38, %v578
  %v580 = vsel %vm577, %v579, %v575
  %v581 = vmul.f32 1.0, %v580
  %v582 = vtanh.pop %v562
  %v584 = vrot.slane %v483, 7
  %v586 = vmul.f32 %v581, %v584
  %588 = vrot.lane.b32.xlu0 %v582, 110
  %v589 = vpop.permute.xlu0 %588
  %v591 = vmul.f32 %v581, %v589
  %593 = vrot.lane.b32.xlu0 %v591, 6
  %v594 = vpop.permute.xlu0 %593
  %v596 = vadd.f32 %v586, %v594
  %v597 = vtanh.pop %v596
  %599 = vrot.lane.b32.xlu0 %v597, 6
  %v600 = vpop.permute.xlu0 %599
  %v602 = vmul.f32 %v581, %v600
  %604 = vset.pattern.permute.xlu0 12
  %605 = vperm.xlu0 %604, %v602
  %v606 = vpop.permute.xlu0 %605
  %v608 = vrot.slane %v14, 6
  %v610 = vmul.f32 %v606, %v608
  %v612 = vrot.slane %v610, 7
  %v614 = vadd.f32 %v345, %v612
  %615 = vset.pattern.permute.xlu0 13
  %616 = vperm.xlu0 %615, %v602
  %v617 = vpop.permute.xlu0 %616
  %v619 = vrot.slane %v15, 6
  %v621 = vmul.f32 %v617, %v619
  %v623 = vrot.slane %v621, 7
  %v625 = vadd.f32 %v614, %v623
  %626 = vset.pattern.permute.xlu0 14
  %627 = vperm.xlu0 %626, %v602
  %v628 = vpop.permute.xlu0 %627
  %v630 = vrot.slane %v16, 6
  %v632 = vmul.f32 %v628, %v630
  %v634 = vrot.slane %v632, 7
  %v636 = vadd.f32 %v625, %v634
  %637 = vset.pattern.permute.xlu0 15
  %638 = vperm.xlu0 %637, %v602
  %v639 = vpop.permute.xlu0 %638
  %v641 = vrot.slane %v17, 6
  %v643 = vmul.f32 %v639, %v641
  %v645 = vrot.slane %v643, 7
  %v647 = vadd.f32 %v636, %v645
  %648 = vset.pattern.permute.xlu0 16
  %649 = vperm.xlu0 %648, %v602
  %v650 = vpop.permute.xlu0 %649
  %v652 = vrot.slane %v18, 6
  %v654 = vmul.f32 %v650, %v652
  %v656 = vrot.slane %v654, 7
  %v658 = vadd.f32 %v647, %v656
  %659 = vset.pattern.permute.xlu0 17
  %660 = vperm.xlu0 %659, %v602
  %v661 = vpop.permute.xlu0 %660
  %v663 = vrot.slane %v19, 6
  %v665 = vmul.f32 %v661, %v663
  %v667 = vrot.slane %v665, 7
  %v669 = vadd.f32 %v658, %v667
  %v670 = vxor.u32 %v669, 2147483648
  %v671 = vmul.f32 %v670, 1.442695
  %v672 = vpow.pop %v671
  %v673 = vadd.f32 %v672, 1.0
  %v674 = vrcp.pop %v673
  %v675 = vmul.f32 %v673, %v674
  %v676 = vsub.f32 1.0, %v675
  %v677 = vmul.f32 %v674, %v676
  %v678 = vadd.f32 %v674, %v677
  %vm679 = vweird.f32 %v673
  %vm680 = vweird.f32 %v674
  %vm681 = vmor %vm679, %vm680
  %v682 = vsel %vm681, %v674, %v678
  %v683 = vand.u32 2147483647, %v673
  %vm684 = vcmp.eq.f32.partialorder %v683, 8.507059e+37
  %v685 = vand.u32 %v673, 2147483648
  %v686 = vor.u32 1.1754944e-38, %v685
  %v687 = vsel %vm684, %v686, %v682
  %v688 = vmul.f32 1.0, %v687
  %v689 = vtanh.pop %v669
  %v691 = vrot.slane %v596, 7
  %v693 = vmul.f32 %v688, %v691
  %695 = vrot.lane.b32.xlu0 %v689, 110
  %v696 = vpop.permute.xlu0 %695
  %v698 = vmul.f32 %v688, %v696
  %700 = vrot.lane.b32.xlu0 %v698, 6
  %v701 = vpop.permute.xlu0 %700
  %v703 = vadd.f32 %v693, %v701
  %v704 = vtanh.pop %v703
  %706 = vrot.lane.b32.xlu0 %v704, 6
  %v707 = vpop.permute.xlu0 %706
  %v709 = vmul.f32 %v688, %v707
  %711 = vset.pattern.permute.xlu0 12
  %712 = vperm.xlu0 %711, %v709
  %v713 = vpop.permute.xlu0 %712
  %v715 = vrot.slane %v14, 5
  %v717 = vmul.f32 %v713, %v715
  %v719 = vrot.slane %v717, 7
  %v721 = vadd.f32 %v345, %v719
  %722 = vset.pattern.permute.xlu0 13
  %723 = vperm.xlu0 %722, %v709
  %v724 = vpop.permute.xlu0 %723
  %v726 = vrot.slane %v15, 5
  %v728 = vmul.f32 %v724, %v726
  %v730 = vrot.slane %v728, 7
  %v732 = vadd.f32 %v721, %v730
  %733 = vset.pattern.permute.xlu0 14
  %734 = vperm.xlu0 %733, %v709
  %v735 = vpop.permute.xlu0 %734
  %v737 = vrot.slane %v16, 5
  %v739 = vmul.f32 %v735, %v737
  %v741 = vrot.slane %v739, 7
  %v743 = vadd.f32 %v732, %v741
  %744 = vset.pattern.permute.xlu0 15
  %745 = vperm.xlu0 %744, %v709
  %v746 = vpop.permute.xlu0 %745
  %v748 = vrot.slane %v17, 5
  %v750 = vmul.f32 %v746, %v748
  %v752 = vrot.slane %v750, 7
  %v754 = vadd.f32 %v743, %v752
  %755 = vset.pattern.permute.xlu0 16
  %756 = vperm.xlu0 %755, %v709
  %v757 = vpop.permute.xlu0 %756
  %v759 = vrot.slane %v18, 5
  %v761 = vmul.f32 %v757, %v759
  %v763 = vrot.slane %v761, 7
  %v765 = vadd.f32 %v754, %v763
  %766 = vset.pattern.permute.xlu0 17
  %767 = vperm.xlu0 %766, %v709
  %v768 = vpop.permute.xlu0 %767
  %v770 = vrot.slane %v19, 5
  %v772 = vmul.f32 %v768, %v770
  %v774 = vrot.slane %v772, 7
  %v776 = vadd.f32 %v765, %v774
  %v777 = vxor.u32 %v776, 2147483648
  %v778 = vmul.f32 %v777, 1.442695
  %v779 = vpow.pop %v778
  %v780 = vadd.f32 %v779, 1.0
  %v781 = vrcp.pop %v780
  %v782 = vmul.f32 %v780, %v781
  %v783 = vsub.f32 1.0, %v782
  %v784 = vmul.f32 %v781, %v783
  %v785 = vadd.f32 %v781, %v784
  %vm786 = vweird.f32 %v780
  %vm787 = vweird.f32 %v781
  %vm788 = vmor %vm786, %vm787
  %v789 = vsel %vm788, %v781, %v785
  %v790 = vand.u32 2147483647, %v780
  %vm791 = vcmp.eq.f32.partialorder %v790, 8.507059e+37
  %v792 = vand.u32 %v780, 2147483648
  %v793 = vor.u32 1.1754944e-38, %v792
  %v794 = vsel %vm791, %v793, %v789
  %v795 = vmul.f32 1.0, %v794
  %v796 = vtanh.pop %v776
  %v798 = vrot.slane %v703, 7
  %v800 = vmul.f32 %v795, %v798
  %802 = vrot.lane.b32.xlu0 %v796, 110
  %v803 = vpop.permute.xlu0 %802
  %v805 = vmul.f32 %v795, %v803
  %807 = vrot.lane.b32.xlu0 %v805, 6
  %v808 = vpop.permute.xlu0 %807
  %v810 = vadd.f32 %v800, %v808
  %v811 = vtanh.pop %v810
  %813 = vrot.lane.b32.xlu0 %v811, 6
  %v814 = vpop.permute.xlu0 %813
  %v816 = vmul.f32 %v795, %v814
  %vm817 = vcmask 1040384
  %v818 = vsel %vm817, %v394, %v489
  %vm819 = vcmask 1041408
  %v820 = vsel %vm819, %v818, %v602
  %v821 = vsel %vm321, %v820, %v709
  %vm822 = vcmask 1043456
  %v823 = vsel %vm822, %v821, %v816
  %v824 = vld [vmem:[%s1 + $0xc] sm:$0x3f]
  %v825 = vld [vmem:[%s1 + $0x12] sm:$0x1]
  %v826 = vperm.slane %v825, 0
  %828 = vrot.lane.b32.xlu0 %v823, 116
  %v829 = vpop.permute.xlu0 %828
  %vm830 = vcmask 48128
  %v831 = vsel %vm830, %v829, 0
  %vm833 = vcmask 1045504
  %v835 = vsel %vm833, %v824, 0
  %837 = vmatpush.msra.mxu0 0.0
  %838 = vmatpush.msra.mxu0 0.0
  %839 = vmatpush.msra.mxu0 0.0
  %840 = vmatpush.msra.mxu0 0.0
  %841 = vmatpush.msra.mxu0 0.0
  %842 = vmatpush.msra.mxu0 0.0
  %843 = vmatpush.msra.mxu0 0.0
  %844 = vmatpush.msra.mxu0 0.0
  %845 = vmatpush.msra.mxu0 0.0
  %846 = vmatpush.msra.mxu0 0.0
  %847 = vmatpush.msra.mxu0 0.0
  %848 = vmatpush.msra.mxu0 0.0
  %849 = vmatpush.msra.mxu0 0.0
  %850 = vmatpush.msra.mxu0 0.0
  %851 = vmatpush.msra.mxu0 0.0
  %852 = vmatpush.msra.mxu0 %v835
  %853 = vmatmul.f32.gmra.mxu0 %v831
  %v854 = vpop.f32.mrf.mxu0
  %v855 = vadd.f32 %v826, %v854
  %856 = vdwg.mxu0
  %vm857 = vcmask 20480
  %v858 = vsel %vm857, %v855, -inf
  %859 = vmax.xlane.f32.xlu0 %v858
  %v860 = vpop.xlane.xlu0 %859
  %v861 = vsub.f32 %v855, %v860
  %v862 = vmul.f32 %v861, 1.442695
  %v863 = vpow.pop %v862
  %v864 = vsel %vm857, %v863, 0.0
  %865 = vadd.xlane.f32.xlu0 %v864
  %v866 = vpop.xlane.xlu0 %865
  %v867 = vlog2.pop %v866
  %v868 = vmul.f32 %v867, 0.6931472
  %v869 = vsub.f32 %v861, %v868
  %870 = vst.msk [vmem:[%s2] sm:$0x1f] %vm857, %v869
  // Predicated region
  $region10: #{lstm_tagger_forward.1} parent=0 // pred_check
    _
  $region11: #{lstm_tagger_forward.1} parent=0 // pred_check_branch
    %872 = sbr.rel (0) target = $region13
  $region12: #{lstm_tagger_forward.1} parent=0 // pred_region
    _
  $region13: #{lstm_tagger_forward.1} parent=0 // pred_fallthru
    _
  // Predicated region
  $region14: #{lstm_tagger_forward.1} parent=0 // pred_check
    _
  $region15: #{lstm_tagger_forward.1} parent=0 // pred_check_branch
    %874 = sbr.rel (0) target = $region17
  $region16: #{lstm_tagger_forward.1} parent=0 // pred_region
    _
  $region17: #{lstm_tagger_forward.1} parent=0 // pred_fallthru
    _

</llo_original>
